<compile_context>
chip_gen: v6e
topology: v6e:2x2x1
jax: 0.10.0
libtpu: 0.0.40
codegen_flags: <defaults>
</compile_context>

<pallas_src>
import functools
import math

import jax
import jax.numpy as jnp
from jax.experimental import pallas as pl
from jax.experimental.pallas import tpu as pltpu

EPS = 1e-5                      # torch.nn.LayerNorm default
# Safe on v7x (64 MiB physical).  TODO(synk): raise toward ~96 MiB on v5e/v6e and
# sweep larger FF tiles (tm=512, th=1024) there.
_VMEM_LIMIT = 48 * 1024 * 1024


def _mm(a, b, mm_dtype):
    """MXU matmul with f32 accumulation; inputs fed in the MXU-native dtype."""
    return jnp.dot(a.astype(mm_dtype), b.astype(mm_dtype),
                   preferred_element_type=jnp.float32)


def _mm_nt(a, b, mm_dtype):
    """a @ b.T by contracting the last dims of both operands (no explicit transpose)."""
    return jax.lax.dot_general(a.astype(mm_dtype), b.astype(mm_dtype),
                               (((1,), (1,)), ((), ())),
                               preferred_element_type=jnp.float32)


def _layernorm_f32(x, gamma, beta):
    """LayerNorm over the last dim, biased variance, two-pass (x-mean) form."""
    mean = jnp.mean(x, axis=-1, keepdims=True)
    xc = x - mean
    var = jnp.mean(xc * xc, axis=-1, keepdims=True)
    return xc * jax.lax.rsqrt(var + EPS) * gamma + beta


# --------------------------------------------------------------------------------------
# Residual + PreNorm + Attention : grid = (batch,), full-width projections,
# per-head loop only for softmax / AV (lane slices of q/k/v, no relayout).
# --------------------------------------------------------------------------------------
def _attn_kernel(x_ref, g_ref, be_ref, wqkv_ref, wo_ref, bo_ref, o_ref, *,
                 heads, dim_head, scale, mm_dtype):
    x = x_ref[0].astype(jnp.float32)                               # (N, D) residual input
    y = _layernorm_f32(x, g_ref[...].astype(jnp.float32),
                       be_ref[...].astype(jnp.float32))            # (N, D), once per batch

    inner = heads * dim_head
    qkv = _mm(y, wqkv_ref[...], mm_dtype)                          # (N, 3*inner) one matmul
    q = qkv[:, 0 * inner:1 * inner] * scale                        # scale q, not the scores
    k = qkv[:, 1 * inner:2 * inner]
    v = qkv[:, 2 * inner:3 * inner]

    head_outs = []
    for h in range(heads):                                         # static unroll, lane slices
        sl = slice(h * dim_head, (h + 1) * dim_head)
        dots = _mm_nt(q[:, sl], k[:, sl], mm_dtype)                # (N, N) q @ k^T, no .T
        dots_max = jnp.max(dots, axis=-1, keepdims=True)
        p = jnp.exp(dots - dots_max)
        l = jnp.sum(p, axis=-1, keepdims=True)
        attn = p * pl.reciprocal(l, approx=True)                   # EUP recip, not VPU div
        head_outs.append(_mm(attn, v[:, sl], mm_dtype))            # (N, dim_head)

    head_cat = jnp.concatenate(head_outs, axis=-1)                 # (N, inner)
    out = _mm(head_cat, wo_ref[...], mm_dtype)                     # (N, D) one matmul

    o_ref[0] = (x + out + bo_ref[...].astype(jnp.float32)).astype(o_ref.dtype)


def attention_block(x, gamma, beta, wqkv, wout, bout, *, heads, dim_head, mm_dtype=None):
    """x: (B, N, D); wqkv: (D, 3*heads*dim_head); wout: (heads*dim_head, D)."""
    B, N, D = x.shape
    inner = heads * dim_head
    assert wqkv.shape == (D, 3 * inner) and wout.shape == (inner, D)
    if mm_dtype is None:
        mm_dtype = jnp.bfloat16 if x.dtype == jnp.bfloat16 else jnp.float32
    if mm_dtype == jnp.bfloat16:
        # pre-cast weights in HBM: halves the dominant weight-stream DMA bytes
        wqkv = wqkv.astype(jnp.bfloat16)
        wout = wout.astype(jnp.bfloat16)
    scale = float(D) ** (-0.5)  # torch: self.scale = dim ** (-0.5)  (model dim)

    # TODO(synk): for long sequences (VMEM-bound on v7x), add a q-row tile grid axis /
    #             flash-style online softmax over KV tiles instead of (N,N) scores.
    kernel = functools.partial(_attn_kernel, heads=heads, dim_head=dim_head,
                               scale=scale, mm_dtype=mm_dtype)
    return pl.pallas_call(
        kernel,
        out_shape=jax.ShapeDtypeStruct((B, N, D), x.dtype),
        grid_spec=pltpu.PrefetchScalarGridSpec(
            num_scalar_prefetch=0,
            grid=(B,),
            in_specs=[
                pl.BlockSpec((1, N, D), lambda b: (b, 0, 0)),          # x
                pl.BlockSpec((1, D), lambda b: (0, 0)),                # gamma
                pl.BlockSpec((1, D), lambda b: (0, 0)),                # beta
                pl.BlockSpec((D, 3 * inner), lambda b: (0, 0)),        # Wqkv (full width)
                pl.BlockSpec((inner, D), lambda b: (0, 0)),            # Wout (full width)
                pl.BlockSpec((1, D), lambda b: (0, 0)),                # b_out
            ],
            out_specs=pl.BlockSpec((1, N, D), lambda b: (b, 0, 0)),
        ),
        compiler_params=pltpu.CompilerParams(
            dimension_semantics=("parallel",),       # batch shards across v7x TensorCores
            vmem_limit_bytes=_VMEM_LIMIT,
        ),
    )(x, gamma.reshape(1, D), beta.reshape(1, D), wqkv, wout, bout.reshape(1, D))


# --------------------------------------------------------------------------------------
# Residual + PreNorm + FeedForward (Linear -> GELU -> Linear), hidden-dim tiled,
# LayerNorm hoisted out of the hidden-tile reduction loop.
# --------------------------------------------------------------------------------------
def _ff_kernel(x_ref, g_ref, be_ref, w1_ref, b1_ref, w2_ref, b2_ref, o_ref,
               acc_ref, y_ref, *, mm_dtype):
    j = pl.program_id(1)

    @pl.when(j == 0)
    def _():
        x = x_ref[...].astype(jnp.float32)                          # (tm, D)
        y_ref[...] = _layernorm_f32(x, g_ref[...].astype(jnp.float32),
                                    be_ref[...].astype(jnp.float32))
        acc_ref[...] = x + b2_ref[...].astype(jnp.float32)          # residual + final bias

    hid = _mm(y_ref[...], w1_ref[...], mm_dtype) + b1_ref[...].astype(jnp.float32)
    # exact GELU (torch nn.GELU default, erf form)
    hid = 0.5 * hid * (1.0 + jax.lax.erf(hid * (1.0 / math.sqrt(2.0))))
    acc_ref[...] += _mm(hid, w2_ref[...], mm_dtype)                 # (tm, D)

    @pl.when(j == pl.num_programs(1) - 1)
    def _():
        o_ref[...] = acc_ref[...].astype(o_ref.dtype)


def feedforward_block(x, gamma, beta, w1, b1, w2, b2, *, tm=256, th=512, mm_dtype=None):
    """x: (B, N, D); w1: (D, H); w2: (H, D)."""
    B, N, D = x.shape
    Hdim = w1.shape[1]
    rows = B * N
    if mm_dtype is None:
        mm_dtype = jnp.bfloat16 if x.dtype == jnp.bfloat16 else jnp.float32
    if mm_dtype == jnp.bfloat16:
        w1 = w1.astype(jnp.bfloat16)
        w2 = w2.astype(jnp.bfloat16)

    tm = min(tm, rows)
    th = min(th, Hdim)

    # Zero-pad ragged row / hidden tails (padding rows/columns contribute exactly 0).
    x2 = x.reshape(rows, D)
    rows_p = pl.cdiv(rows, tm) * tm
    if rows_p != rows:
        x2 = jnp.pad(x2, ((0, rows_p - rows), (0, 0)))
    Hp = pl.cdiv(Hdim, th) * th
    if Hp != Hdim:
        w1 = jnp.pad(w1, ((0, 0), (0, Hp - Hdim)))
        b1 = jnp.pad(b1, ((0, Hp - Hdim),))
        w2 = jnp.pad(w2, ((0, Hp - Hdim), (0, 0)))

    out = pl.pallas_call(
        functools.partial(_ff_kernel, mm_dtype=mm_dtype),
        out_shape=jax.ShapeDtypeStruct((rows_p, D), x.dtype),
        grid_spec=pltpu.PrefetchScalarGridSpec(
            num_scalar_prefetch=0,
            grid=(rows_p // tm, Hp // th),
            in_specs=[
                pl.BlockSpec((tm, D), lambda i, j: (i, 0)),    # x row tile (resident over j)
                pl.BlockSpec((1, D), lambda i, j: (0, 0)),     # gamma
                pl.BlockSpec((1, D), lambda i, j: (0, 0)),     # beta
                pl.BlockSpec((D, th), lambda i, j: (0, j)),    # W1 column tile
                pl.BlockSpec((1, th), lambda i, j: (0, j)),    # b1 column tile
                pl.BlockSpec((th, D), lambda i, j: (j, 0)),    # W2 row tile
                pl.BlockSpec((1, D), lambda i, j: (0, 0)),     # b2
            ],
            out_specs=pl.BlockSpec((tm, D), lambda i, j: (i, 0)),
            scratch_shapes=[pltpu.VMEM((tm, D), jnp.float32),  # f32 accumulator
                            pltpu.VMEM((tm, D), jnp.float32)], # hoisted LN(x)
        ),
        compiler_params=pltpu.CompilerParams(
            dimension_semantics=("parallel", "arbitrary"),
            vmem_limit_bytes=_VMEM_LIMIT,
        ),
    )(x2, gamma.reshape(1, D), beta.reshape(1, D), w1, b1.reshape(1, Hp),
      w2, b2.reshape(1, D))
    return out[:rows].reshape(B, N, D)


# --------------------------------------------------------------------------------------
# Full Transformer forward (loop over depth; dropout=0.0 / eval => identity)
# --------------------------------------------------------------------------------------
def transformer_forward(x, layers, *, heads, dim_head, mask=None):
    # TODO(synk): the optional attention mask path (F.pad + key/query outer product)
    #             is not implemented; this matches forward(x, mask=None).
    # TODO(synk): nn.Dropout is identity at inference / dropout=0.0, so it is omitted.
    # TODO(synk): on v7x, fp8 weight storage for the FF / projections would halve weight
    #             DMA again vs bf16 (fp8 MXU, f32 accumulation).
    assert mask is None, "mask path not implemented"
    for p in layers:
        x = attention_block(x, p["ln1_g"], p["ln1_b"], p["wqkv"], p["wo"], p["bo"],
                            heads=heads, dim_head=dim_head)
        x = feedforward_block(x, p["ln2_g"], p["ln2_b"],
                              p["w1"], p["b1"], p["w2"], p["b2"])
    return x


# --------------------------------------------------------------------------------------
# Pure-JAX reference (torch semantics) for correctness checking
# --------------------------------------------------------------------------------------
def _layernorm_ref(x, g, b):
    m = jnp.mean(x, axis=-1, keepdims=True)
    v = jnp.mean((x - m) ** 2, axis=-1, keepdims=True)
    return (x - m) * jax.lax.rsqrt(v + EPS) * g + b


def transformer_ref(x, layers, *, heads, dim_head):
    x = x.astype(jnp.float32)
    B, N, D = x.shape
    scale = float(D) ** (-0.5)

    def split_heads(t):
        return t.reshape(B, N, heads, dim_head).transpose(0, 2, 1, 3)

    for p in layers:
        y = _layernorm_ref(x, p["ln1_g"], p["ln1_b"])
        qkv = y @ p["wqkv"]
        q, k, v = (split_heads(t) for t in jnp.split(qkv, 3, axis=-1))
        dots = jnp.einsum("bhid,bhjd->bhij", q, k) * scale
        attn = jax.nn.softmax(dots, axis=-1)
        o = jnp.einsum("bhij,bhjd->bhid", attn, v)
        o = o.transpose(0, 2, 1, 3).reshape(B, N, heads * dim_head)
        x = x + o @ p["wo"] + p["bo"]

        y = _layernorm_ref(x, p["ln2_g"], p["ln2_b"])
        h = y @ p["w1"] + p["b1"]
        h = 0.5 * h * (1.0 + jax.lax.erf(h / math.sqrt(2.0)))
        x = x + h @ p["w2"] + p["b2"]
    return x


if __name__ == "__main__":
    # Small Transformer with lane-friendly dims: dim=128, depth=2, heads=4, dim_head=32,
    # mlp_dim=256, dropout=0.0  (D and inner multiples of 128 -> unmasked stores).
    B, N = 2, 8
    dim, depth, heads, dim_head, mlp_dim = 128, 2, 4, 32, 256
    inner = heads * dim_head

    key = jax.random.PRNGKey(0)
    key, kx = jax.random.split(key)
    x = jax.random.normal(kx, (B, N, dim), dtype=jnp.float32)

    layers = []
    for _ in range(depth):
        keys = jax.random.split(key, 8)
        key = keys[0]
        layers.append(dict(
            ln1_g=jnp.ones((dim,), jnp.float32),
            ln1_b=jnp.zeros((dim,), jnp.float32),
            wqkv=jax.random.normal(keys[1], (dim, 3 * inner), jnp.float32) / math.sqrt(dim),
            wo=jax.random.normal(keys[2], (inner, dim), jnp.float32) / math.sqrt(inner),
            bo=jax.random.normal(keys[3], (dim,), jnp.float32) * 0.01,
            ln2_g=jnp.ones((dim,), jnp.float32),
            ln2_b=jnp.zeros((dim,), jnp.float32),
            w1=jax.random.normal(keys[4], (dim, mlp_dim), jnp.float32) / math.sqrt(dim),
            b1=jax.random.normal(keys[5], (mlp_dim,), jnp.float32) * 0.01,
            w2=jax.random.normal(keys[6], (mlp_dim, dim), jnp.float32) / math.sqrt(mlp_dim),
            b2=jax.random.normal(keys[7], (dim,), jnp.float32) * 0.01,
        ))

    # f32 path: exact torch semantics, checked tightly against the f32 reference.
    # (The bf16 production path uses the same kernels with mm_dtype=bf16 / pre-cast
    #  weights; it is not exercised here because the CPU/interpret dot fallback does
    #  not support BF16 x BF16 -> F32.)
    out = transformer_forward(x, layers, heads=heads, dim_head=dim_head)
    out = jax.block_until_ready(out)
    ref = transformer_ref(x, layers, heads=heads, dim_head=dim_head)
    assert jnp.allclose(out, ref.astype(out.dtype), atol=5e-3, rtol=5e-3), \
        "kernel mismatch vs reference"

    print("KERNEL_OK")
</pallas_src>

<mosaic_0001>
module attributes {stable_mosaic.version = 11 : i64} {
  func.func @_attn_kernel(%arg0: i32, %arg1: memref<1x8x128xf32, #tpu.memory_space<vmem>>, %arg2: memref<1x128xf32, #tpu.memory_space<vmem>>, %arg3: memref<1x128xf32, #tpu.memory_space<vmem>>, %arg4: memref<128x384xf32, #tpu.memory_space<vmem>>, %arg5: memref<128x128xf32, #tpu.memory_space<vmem>>, %arg6: memref<1x128xf32, #tpu.memory_space<vmem>>, %arg7: memref<1x8x128xf32, #tpu.memory_space<vmem>>) attributes {dimension_semantics = [#tpu.dimension_semantics<parallel>], iteration_bounds = array<i64: 2>, scalar_prefetch = 0 : i64, scratch_operands = 0 : i64, tpu.core_type = #tpu.core_type<tc>, window_params = [{transform_indices = @transform_0, window_bounds = array<i64: 1, 8, 128>}, {pipeline_mode = #tpu.pipeline_mode<synchronous>, transform_indices = @transform_1, window_bounds = array<i64: 1, 128>}, {pipeline_mode = #tpu.pipeline_mode<synchronous>, transform_indices = @transform_2, window_bounds = array<i64: 1, 128>}, {pipeline_mode = #tpu.pipeline_mode<synchronous>, transform_indices = @transform_3, window_bounds = array<i64: 128, 384>}, {pipeline_mode = #tpu.pipeline_mode<synchronous>, transform_indices = @transform_4, window_bounds = array<i64: 128, 128>}, {pipeline_mode = #tpu.pipeline_mode<synchronous>, transform_indices = @transform_5, window_bounds = array<i64: 1, 128>}, {transform_indices = @transform_6, window_bounds = array<i64: 1, 8, 128>}]} {
    %c0 = arith.constant 0 : index
    %c0_0 = arith.constant 0 : index
    %c0_1 = arith.constant 0 : index
    %0 = vector.load %arg1[%c0, %c0_0, %c0_1] : memref<1x8x128xf32, #tpu.memory_space<vmem>>, vector<1x8x128xf32>
    %1 = vector.shape_cast %0 : vector<1x8x128xf32> to vector<8x128xf32>
    %c0_2 = arith.constant 0 : index
    %c0_3 = arith.constant 0 : index
    %2 = vector.load %arg2[%c0_2, %c0_3] : memref<1x128xf32, #tpu.memory_space<vmem>>, vector<1x128xf32>
    %c0_4 = arith.constant 0 : index
    %c0_5 = arith.constant 0 : index
    %3 = vector.load %arg3[%c0_4, %c0_5] : memref<1x128xf32, #tpu.memory_space<vmem>>, vector<1x128xf32>
    %cst = arith.constant dense<0.000000e+00> : vector<8xf32>
    %4 = vector.multi_reduction <add>, %1, %cst [1] : vector<8x128xf32> to vector<8xf32>
    %5 = vector.shape_cast %4 : vector<8xf32> to vector<8x1xf32>
    %cst_6 = arith.constant 1.280000e+02 : f32
    %6 = vector.broadcast %cst_6 : f32 to vector<8x1xf32>
    %7 = arith.divf %5, %6 : vector<8x1xf32>
    %8 = vector.broadcast %7 : vector<8x1xf32> to vector<8x128xf32>
    %9 = arith.subf %1, %8 : vector<8x128xf32>
    %10 = arith.mulf %9, %9 : vector<8x128xf32>
    %cst_7 = arith.constant dense<0.000000e+00> : vector<8xf32>
    %11 = vector.multi_reduction <add>, %10, %cst_7 [1] : vector<8x128xf32> to vector<8xf32>
    %12 = vector.shape_cast %11 : vector<8xf32> to vector<8x1xf32>
    %cst_8 = arith.constant 1.280000e+02 : f32
    %13 = vector.broadcast %cst_8 : f32 to vector<8x1xf32>
    %14 = arith.divf %12, %13 : vector<8x1xf32>
    %cst_9 = arith.constant 9.99999974E-6 : f32
    %15 = vector.broadcast %cst_9 : f32 to vector<8x1xf32>
    %16 = arith.addf %14, %15 : vector<8x1xf32>
    %17 = math.rsqrt %16 : vector<8x1xf32>
    %18 = vector.broadcast %17 : vector<8x1xf32> to vector<8x128xf32>
    %19 = arith.mulf %9, %18 : vector<8x128xf32>
    %20 = vector.broadcast %2 : vector<1x128xf32> to vector<8x128xf32>
    %21 = arith.mulf %19, %20 : vector<8x128xf32>
    %22 = vector.broadcast %3 : vector<1x128xf32> to vector<8x128xf32>
    %23 = arith.addf %21, %22 : vector<8x128xf32>
    %c0_10 = arith.constant 0 : index
    %c0_11 = arith.constant 0 : index
    %24 = vector.load %arg4[%c0_10, %c0_11] : memref<128x384xf32, #tpu.memory_space<vmem>>, vector<128x384xf32>
    %cst_12 = arith.constant dense<0.000000e+00> : vector<8x384xf32>
    %25 = tpu.matmul %23, %24, %cst_12 {dimension_numbers = #tpu.dot_dimension_numbers<[1], [0], [0], [1], [0, 0, 1, 1], [], []>} : vector<8x128xf32>, vector<128x384xf32>, vector<8x384xf32> -> vector<8x384xf32>
    %26 = vector.extract_strided_slice %25 {offsets = [0, 0], sizes = [8, 128], strides = [1, 1]} : vector<8x384xf32> to vector<8x128xf32>
    %cst_13 = arith.constant 0.0883883461 : f32
    %27 = vector.broadcast %cst_13 : f32 to vector<8x128xf32>
    %28 = arith.mulf %26, %27 : vector<8x128xf32>
    %29 = vector.extract_strided_slice %25 {offsets = [0, 128], sizes = [8, 128], strides = [1, 1]} : vector<8x384xf32> to vector<8x128xf32>
    %30 = vector.extract_strided_slice %25 {offsets = [0, 256], sizes = [8, 128], strides = [1, 1]} : vector<8x384xf32> to vector<8x128xf32>
    %31 = vector.extract_strided_slice %28 {offsets = [0, 0], sizes = [8, 32], strides = [1, 1]} : vector<8x128xf32> to vector<8x32xf32>
    %32 = vector.extract_strided_slice %29 {offsets = [0, 0], sizes = [8, 32], strides = [1, 1]} : vector<8x128xf32> to vector<8x32xf32>
    %cst_14 = arith.constant dense<0.000000e+00> : vector<8x8xf32>
    %33 = tpu.matmul %31, %32, %cst_14 {dimension_numbers = #tpu.dot_dimension_numbers<[1], [1], [0], [0], [0, 0, 1, 0], [], []>} : vector<8x32xf32>, vector<8x32xf32>, vector<8x8xf32> -> vector<8x8xf32>
    %cst_15 = arith.constant dense<0xFF800000> : vector<8xf32>
    %34 = vector.multi_reduction <maximumf>, %33, %cst_15 [1] : vector<8x8xf32> to vector<8xf32>
    %35 = vector.shape_cast %34 : vector<8xf32> to vector<8x1xf32>
    %36 = vector.broadcast %35 : vector<8x1xf32> to vector<8x8xf32>
    %37 = arith.subf %33, %36 : vector<8x8xf32>
    %38 = math.exp %37 : vector<8x8xf32>
    %cst_16 = arith.constant dense<0.000000e+00> : vector<8xf32>
    %39 = vector.multi_reduction <add>, %38, %cst_16 [1] : vector<8x8xf32> to vector<8xf32>
    %40 = vector.shape_cast %39 : vector<8xf32> to vector<8x1xf32>
    %41 = tpu.reciprocal %40 {approx = true} : vector<8x1xf32> -> vector<8x1xf32>
    %42 = vector.broadcast %41 : vector<8x1xf32> to vector<8x8xf32>
    %43 = arith.mulf %38, %42 : vector<8x8xf32>
    %44 = vector.extract_strided_slice %30 {offsets = [0, 0], sizes = [8, 32], strides = [1, 1]} : vector<8x128xf32> to vector<8x32xf32>
    %cst_17 = arith.constant dense<0.000000e+00> : vector<8x32xf32>
    %45 = tpu.matmul %43, %44, %cst_17 {dimension_numbers = #tpu.dot_dimension_numbers<[1], [0], [0], [1], [0, 0, 1, 1], [], []>} : vector<8x8xf32>, vector<8x32xf32>, vector<8x32xf32> -> vector<8x32xf32>
    %46 = vector.extract_strided_slice %28 {offsets = [0, 32], sizes = [8, 32], strides = [1, 1]} : vector<8x128xf32> to vector<8x32xf32>
    %47 = vector.extract_strided_slice %29 {offsets = [0, 32], sizes = [8, 32], strides = [1, 1]} : vector<8x128xf32> to vector<8x32xf32>
    %cst_18 = arith.constant dense<0.000000e+00> : vector<8x8xf32>
    %48 = tpu.matmul %46, %47, %cst_18 {dimension_numbers = #tpu.dot_dimension_numbers<[1], [1], [0], [0], [0, 0, 1, 0], [], []>} : vector<8x32xf32>, vector<8x32xf32>, vector<8x8xf32> -> vector<8x8xf32>
    %cst_19 = arith.constant dense<0xFF800000> : vector<8xf32>
    %49 = vector.multi_reduction <maximumf>, %48, %cst_19 [1] : vector<8x8xf32> to vector<8xf32>
    %50 = vector.shape_cast %49 : vector<8xf32> to vector<8x1xf32>
    %51 = vector.broadcast %50 : vector<8x1xf32> to vector<8x8xf32>
    %52 = arith.subf %48, %51 : vector<8x8xf32>
    %53 = math.exp %52 : vector<8x8xf32>
    %cst_20 = arith.constant dense<0.000000e+00> : vector<8xf32>
    %54 = vector.multi_reduction <add>, %53, %cst_20 [1] : vector<8x8xf32> to vector<8xf32>
    %55 = vector.shape_cast %54 : vector<8xf32> to vector<8x1xf32>
    %56 = tpu.reciprocal %55 {approx = true} : vector<8x1xf32> -> vector<8x1xf32>
    %57 = vector.broadcast %56 : vector<8x1xf32> to vector<8x8xf32>
    %58 = arith.mulf %53, %57 : vector<8x8xf32>
    %59 = vector.extract_strided_slice %30 {offsets = [0, 32], sizes = [8, 32], strides = [1, 1]} : vector<8x128xf32> to vector<8x32xf32>
    %cst_21 = arith.constant dense<0.000000e+00> : vector<8x32xf32>
    %60 = tpu.matmul %58, %59, %cst_21 {dimension_numbers = #tpu.dot_dimension_numbers<[1], [0], [0], [1], [0, 0, 1, 1], [], []>} : vector<8x8xf32>, vector<8x32xf32>, vector<8x32xf32> -> vector<8x32xf32>
    %61 = vector.extract_strided_slice %28 {offsets = [0, 64], sizes = [8, 32], strides = [1, 1]} : vector<8x128xf32> to vector<8x32xf32>
    %62 = vector.extract_strided_slice %29 {offsets = [0, 64], sizes = [8, 32], strides = [1, 1]} : vector<8x128xf32> to vector<8x32xf32>
    %cst_22 = arith.constant dense<0.000000e+00> : vector<8x8xf32>
    %63 = tpu.matmul %61, %62, %cst_22 {dimension_numbers = #tpu.dot_dimension_numbers<[1], [1], [0], [0], [0, 0, 1, 0], [], []>} : vector<8x32xf32>, vector<8x32xf32>, vector<8x8xf32> -> vector<8x8xf32>
    %cst_23 = arith.constant dense<0xFF800000> : vector<8xf32>
    %64 = vector.multi_reduction <maximumf>, %63, %cst_23 [1] : vector<8x8xf32> to vector<8xf32>
    %65 = vector.shape_cast %64 : vector<8xf32> to vector<8x1xf32>
    %66 = vector.broadcast %65 : vector<8x1xf32> to vector<8x8xf32>
    %67 = arith.subf %63, %66 : vector<8x8xf32>
    %68 = math.exp %67 : vector<8x8xf32>
    %cst_24 = arith.constant dense<0.000000e+00> : vector<8xf32>
    %69 = vector.multi_reduction <add>, %68, %cst_24 [1] : vector<8x8xf32> to vector<8xf32>
    %70 = vector.shape_cast %69 : vector<8xf32> to vector<8x1xf32>
    %71 = tpu.reciprocal %70 {approx = true} : vector<8x1xf32> -> vector<8x1xf32>
    %72 = vector.broadcast %71 : vector<8x1xf32> to vector<8x8xf32>
    %73 = arith.mulf %68, %72 : vector<8x8xf32>
    %74 = vector.extract_strided_slice %30 {offsets = [0, 64], sizes = [8, 32], strides = [1, 1]} : vector<8x128xf32> to vector<8x32xf32>
    %cst_25 = arith.constant dense<0.000000e+00> : vector<8x32xf32>
    %75 = tpu.matmul %73, %74, %cst_25 {dimension_numbers = #tpu.dot_dimension_numbers<[1], [0], [0], [1], [0, 0, 1, 1], [], []>} : vector<8x8xf32>, vector<8x32xf32>, vector<8x32xf32> -> vector<8x32xf32>
    %76 = vector.extract_strided_slice %28 {offsets = [0, 96], sizes = [8, 32], strides = [1, 1]} : vector<8x128xf32> to vector<8x32xf32>
    %77 = vector.extract_strided_slice %29 {offsets = [0, 96], sizes = [8, 32], strides = [1, 1]} : vector<8x128xf32> to vector<8x32xf32>
    %cst_26 = arith.constant dense<0.000000e+00> : vector<8x8xf32>
    %78 = tpu.matmul %76, %77, %cst_26 {dimension_numbers = #tpu.dot_dimension_numbers<[1], [1], [0], [0], [0, 0, 1, 0], [], []>} : vector<8x32xf32>, vector<8x32xf32>, vector<8x8xf32> -> vector<8x8xf32>
    %cst_27 = arith.constant dense<0xFF800000> : vector<8xf32>
    %79 = vector.multi_reduction <maximumf>, %78, %cst_27 [1] : vector<8x8xf32> to vector<8xf32>
    %80 = vector.shape_cast %79 : vector<8xf32> to vector<8x1xf32>
    %81 = vector.broadcast %80 : vector<8x1xf32> to vector<8x8xf32>
    %82 = arith.subf %78, %81 : vector<8x8xf32>
    %83 = math.exp %82 : vector<8x8xf32>
    %cst_28 = arith.constant dense<0.000000e+00> : vector<8xf32>
    %84 = vector.multi_reduction <add>, %83, %cst_28 [1] : vector<8x8xf32> to vector<8xf32>
    %85 = vector.shape_cast %84 : vector<8xf32> to vector<8x1xf32>
    %86 = tpu.reciprocal %85 {approx = true} : vector<8x1xf32> -> vector<8x1xf32>
    %87 = vector.broadcast %86 : vector<8x1xf32> to vector<8x8xf32>
    %88 = arith.mulf %83, %87 : vector<8x8xf32>
    %89 = vector.extract_strided_slice %30 {offsets = [0, 96], sizes = [8, 32], strides = [1, 1]} : vector<8x128xf32> to vector<8x32xf32>
    %cst_29 = arith.constant dense<0.000000e+00> : vector<8x32xf32>
    %90 = tpu.matmul %88, %89, %cst_29 {dimension_numbers = #tpu.dot_dimension_numbers<[1], [0], [0], [1], [0, 0, 1, 1], [], []>} : vector<8x8xf32>, vector<8x32xf32>, vector<8x32xf32> -> vector<8x32xf32>
    %91 = tpu.concatenate %45, %60, %75, %90 in 1 : vector<8x32xf32>, vector<8x32xf32>, vector<8x32xf32>, vector<8x32xf32> -> vector<8x128xf32>
    %c0_30 = arith.constant 0 : index
    %c0_31 = arith.constant 0 : index
    %92 = vector.load %arg5[%c0_30, %c0_31] : memref<128x128xf32, #tpu.memory_space<vmem>>, vector<128x128xf32>
    %cst_32 = arith.constant dense<0.000000e+00> : vector<8x128xf32>
    %93 = tpu.matmul %91, %92, %cst_32 {dimension_numbers = #tpu.dot_dimension_numbers<[1], [0], [0], [1], [0, 0, 1, 1], [], []>} : vector<8x128xf32>, vector<128x128xf32>, vector<8x128xf32> -> vector<8x128xf32>
    %94 = arith.addf %1, %93 : vector<8x128xf32>
    %c0_33 = arith.constant 0 : index
    %c0_34 = arith.constant 0 : index
    %95 = vector.load %arg6[%c0_33, %c0_34] : memref<1x128xf32, #tpu.memory_space<vmem>>, vector<1x128xf32>
    %96 = vector.broadcast %95 : vector<1x128xf32> to vector<8x128xf32>
    %97 = arith.addf %94, %96 : vector<8x128xf32>
    %c0_35 = arith.constant 0 : index
    %c0_36 = arith.constant 0 : index
    %c0_37 = arith.constant 0 : index
    %98 = vector.load %arg7[%c0_35, %c0_36, %c0_37] : memref<1x8x128xf32, #tpu.memory_space<vmem>>, vector<1x8x128xf32>
    %99 = vector.shape_cast %98 : vector<1x8x128xf32> to vector<8x128xf32>
    %100 = vector.shape_cast %97 : vector<8x128xf32> to vector<1x8x128xf32>
    tpu.vector_store %arg7[%c0_35, %c0_36, %c0_37], %100 {strides = array<i32>} : memref<1x8x128xf32, #tpu.memory_space<vmem>>, vector<1x8x128xf32>,
    return
  }
  func.func @transform_0(%arg0: i32) -> (i32, i32, i32) {
    %c0_i32 = arith.constant 0 : i32
    %c0_i32_0 = arith.constant 0 : i32
    %c0_i32_1 = arith.constant 0 : i32
    return %arg0, %c0_i32, %c0_i32_0 : i32, i32, i32
  }
  func.func @transform_1(%arg0: i32) -> (i32, i32) {
    %c0_i32 = arith.constant 0 : i32
    %c0_i32_0 = arith.constant 0 : i32
    %c0_i32_1 = arith.constant 0 : i32
    return %c0_i32, %c0_i32_0 : i32, i32
  }
  func.func @transform_2(%arg0: i32) -> (i32, i32) {
    %c0_i32 = arith.constant 0 : i32
    %c0_i32_0 = arith.constant 0 : i32
    %c0_i32_1 = arith.constant 0 : i32
    return %c0_i32, %c0_i32_0 : i32, i32
  }
  func.func @transform_3(%arg0: i32) -> (i32, i32) {
    %c0_i32 = arith.constant 0 : i32
    %c0_i32_0 = arith.constant 0 : i32
    %c0_i32_1 = arith.constant 0 : i32
    return %c0_i32, %c0_i32_0 : i32, i32
  }
  func.func @transform_4(%arg0: i32) -> (i32, i32) {
    %c0_i32 = arith.constant 0 : i32
    %c0_i32_0 = arith.constant 0 : i32
    %c0_i32_1 = arith.constant 0 : i32
    return %c0_i32, %c0_i32_0 : i32, i32
  }
  func.func @transform_5(%arg0: i32) -> (i32, i32) {
    %c0_i32 = arith.constant 0 : i32
    %c0_i32_0 = arith.constant 0 : i32
    %c0_i32_1 = arith.constant 0 : i32
    return %c0_i32, %c0_i32_0 : i32, i32
  }
  func.func @transform_6(%arg0: i32) -> (i32, i32, i32) {
    %c0_i32 = arith.constant 0 : i32
    %c0_i32_0 = arith.constant 0 : i32
    %c0_i32_1 = arith.constant 0 : i32
    return %arg0, %c0_i32, %c0_i32_0 : i32, i32, i32
  }
}

</mosaic_0001>

<llo_original>
// kernel: tpu_custom_call.1
$region0: #{tpu_custom_call.1}
  #allocation0 [shape = 'u32[]', space=smem, size = 0x4, offset = 0x4, fixed_abs, tag = 'smem constant byte address 0x4 - core index']
  #allocation1 [shape = 'u32[144,128]{1,0:T(1,128)}', space=vmem, size = 0x12000, scoped, tag = 'internal scratch']
  %s0 = inlined_call_operand.hbm [shape: f32[2,8,128], index: 0, kind: input, shape index: {}]
  %s1 = inlined_call_operand.vmem [shape: f32[1,128], index: 1, kind: input, shape index: {}]
  %s2 = inlined_call_operand.vmem [shape: f32[1,128], index: 2, kind: input, shape index: {}]
  %s3 = inlined_call_operand.hbm [shape: f32[128,384], index: 3, kind: input, shape index: {}]
  %s4 = inlined_call_operand.hbm [shape: f32[128,128], index: 4, kind: input, shape index: {}]
  %s5 = inlined_call_operand.vmem [shape: f32[1,128], index: 5, kind: input, shape index: {}]
  %s6 = inlined_call_operand.hbm [shape: f32[2,8,128], index: 6, kind: output, shape index: {}]
  %s7 = sld [smem:[#allocation0]]
  $region69: #{tpu_custom_call.1} parent=0
    _
  %s9 = ssub.s32 1, %s7
  %s10 = scalar_select 0, %s9, %s7
  $region1: #{tpu_custom_call.1} parent=0
    #allocation2 [shape = 'u8[8192]{0}', space=vmem, size = 0x2000, scoped, tag = 'input window, operand 0']
    #allocation3 [shape = 's32[2]{0}', space=sflag, size = 0x8, scoped, tag = 'scoped memory for tpu_custom_call.1']
    #allocation4 [shape = 's32[2]{0}', space=sflag, size = 0x8, scoped, tag = 'scoped memory for tpu_custom_call.1']
    #allocation5 [shape = 'u8[196608]{0}', space=vmem, size = 0x30000, scoped, tag = 'input window, operand 3, single buffered']
    #allocation6 [shape = 's32[1]{0}', space=sflag, size = 0x4, scoped, tag = 'scoped memory for tpu_custom_call.1']
    #allocation7 [shape = 'u8[65536]{0}', space=vmem, size = 0x10000, scoped, tag = 'input window, operand 4, single buffered']
    #allocation8 [shape = 'u8[8192]{0}', space=vmem, size = 0x2000, scoped, tag = 'output window, operand 0']
    %11 = vsyncpa [#allocation3], 0
    %s12 = scalar_lea.sflag [#allocation3], 1
    %13 = vsyncpa %s12, 0
    %14 = vsyncpa [#allocation6], 0
    %15 = vsyncpa [#allocation4], 0
    %s16 = scalar_lea.sflag [#allocation4], 1
    %17 = vsyncpa %s16, 0
    loop: start=0, step=1, limit=4
    $region2: #{tpu_custom_call.1} parent=1 // loop_pre_header
      _
    $region3: #{tpu_custom_call.1} parent=1 // loop_header
      %s19 = sphi 0, %s23
      %p20 = scmp.ge.s32.totalorder %s19, 4
      %s29 = sphi 0, %s31
      %s32 = sphi 0, %s29
      %s33 = sphi 0, %s32
      %s49 = sphi 0, %s33
      %s53 = sphi 0, %s53
      %s55 = sphi 0, %s53
      %s56 = sphi 0, %s55
      %s70 = sphi 0, %s56
      %s74 = sphi 0, %s74
      %s76 = sphi 0, %s74
      %s77 = sphi 0, %s76
      %s91 = sphi 0, %s77
      %s95 = sphi 0, %s95
      %s97 = sphi 0, %s95
      %s98 = sphi 0, %s97
      %s112 = sphi 0, %s98
      %s116 = sphi 0, %s116
      %s118 = sphi 0, %s116
      %s119 = sphi 0, %s118
      %s133 = sphi 0, %s119
      %s137 = sphi 0, %s137
      %s139 = sphi 0, %s137
      %s140 = sphi 0, %s139
      %s154 = sphi 0, %s140
      %s160 = sphi 0, %s162
      %s163 = sphi 0, %s160
      %s164 = sphi 0, %s163
      %s180 = sphi 0, %s164
    $region4: #{tpu_custom_call.1} parent=1 // loop_header_branch
      %22 = sbr.rel (%p20) target = $region8
    $region5: #{tpu_custom_call.1} parent=1 // loop_body
      %s24 = ssub.s32 %s19, 1
      %s25 = ssub.s32 %s19, 2
      %s26 = sadd.s32 %s19, 1
      %s27 = ssub.s32 %s19, %s26
      %p28 = scmp.eq.s32.totalorder %s27, 0
      %s30 = sadd.s32 %s29, 1
      %s31 = scalar_select %p28, %s29, %s30
      %p34 = pneg %p28
      %p35 = scmp.eq.s32.totalorder %s19, 1
      %p36 = por %p34, %p35
      %p37 = scmp.ne.s32.totalorder %s29, %s32
      %p38 = scmp.eq.s32.totalorder %s19, 0
      %p39 = por %p37, %p38
      %p40 = scmp.ne.s32.totalorder %s29, %s32
      %p41 = scmp.eq.s32.totalorder %s24, 1
      %p42 = por %p40, %p41
      %p43 = scmp.ne.s32.totalorder %s32, %s33
      %p44 = scmp.eq.s32.totalorder %s24, 0
      %p45 = por %p43, %p44
      %p46 = scmp.ne.s32.totalorder %s32, %s33
      %p47 = scmp.eq.s32.totalorder %s25, 1
      %p48 = por %p46, %p47
      %p50 = scmp.ne.s32.totalorder %s33, %s49
      %p51 = scmp.eq.s32.totalorder %s25, 0
      %p52 = por %p50, %p51
      %s54 = sadd.s32 %s53, 1
      %p57 = scmp.eq.s32.totalorder %s19, 1
      %p58 = scmp.ne.s32.totalorder %s53, %s55
      %p59 = scmp.eq.s32.totalorder %s19, 0
      %p60 = por %p58, %p59
      %p61 = scmp.ne.s32.totalorder %s53, %s55
      %p62 = scmp.eq.s32.totalorder %s24, 1
      %p63 = por %p61, %p62
      %p64 = scmp.ne.s32.totalorder %s55, %s56
      %p65 = scmp.eq.s32.totalorder %s24, 0
      %p66 = por %p64, %p65
      %p67 = scmp.ne.s32.totalorder %s55, %s56
      %p68 = scmp.eq.s32.totalorder %s25, 1
      %p69 = por %p67, %p68
      %p71 = scmp.ne.s32.totalorder %s56, %s70
      %p72 = scmp.eq.s32.totalorder %s25, 0
      %p73 = por %p71, %p72
      %s75 = sadd.s32 %s74, 1
      %p78 = scmp.eq.s32.totalorder %s19, 1
      %p79 = scmp.ne.s32.totalorder %s74, %s76
      %p80 = scmp.eq.s32.totalorder %s19, 0
      %p81 = por %p79, %p80
      %p82 = scmp.ne.s32.totalorder %s74, %s76
      %p83 = scmp.eq.s32.totalorder %s24, 1
      %p84 = por %p82, %p83
      %p85 = scmp.ne.s32.totalorder %s76, %s77
      %p86 = scmp.eq.s32.totalorder %s24, 0
      %p87 = por %p85, %p86
      %p88 = scmp.ne.s32.totalorder %s76, %s77
      %p89 = scmp.eq.s32.totalorder %s25, 1
      %p90 = por %p88, %p89
      %p92 = scmp.ne.s32.totalorder %s77, %s91
      %p93 = scmp.eq.s32.totalorder %s25, 0
      %p94 = por %p92, %p93
      %s96 = sadd.s32 %s95, 1
      %p99 = scmp.eq.s32.totalorder %s19, 1
      %p100 = scmp.ne.s32.totalorder %s95, %s97
      %p101 = scmp.eq.s32.totalorder %s19, 0
      %p102 = por %p100, %p101
      %p103 = scmp.ne.s32.totalorder %s95, %s97
      %p104 = scmp.eq.s32.totalorder %s24, 1
      %p105 = por %p103, %p104
      %p106 = scmp.ne.s32.totalorder %s97, %s98
      %p107 = scmp.eq.s32.totalorder %s24, 0
      %p108 = por %p106, %p107
      %p109 = scmp.ne.s32.totalorder %s97, %s98
      %p110 = scmp.eq.s32.totalorder %s25, 1
      %p111 = por %p109, %p110
      %p113 = scmp.ne.s32.totalorder %s98, %s112
      %p114 = scmp.eq.s32.totalorder %s25, 0
      %p115 = por %p113, %p114
      %s117 = sadd.s32 %s116, 1
      %p120 = scmp.eq.s32.totalorder %s19, 1
      %p121 = scmp.ne.s32.totalorder %s116, %s118
      %p122 = scmp.eq.s32.totalorder %s19, 0
      %p123 = por %p121, %p122
      %p124 = scmp.ne.s32.totalorder %s116, %s118
      %p125 = scmp.eq.s32.totalorder %s24, 1
      %p126 = por %p124, %p125
      %p127 = scmp.ne.s32.totalorder %s118, %s119
      %p128 = scmp.eq.s32.totalorder %s24, 0
      %p129 = por %p127, %p128
      %p130 = scmp.ne.s32.totalorder %s118, %s119
      %p131 = scmp.eq.s32.totalorder %s25, 1
      %p132 = por %p130, %p131
      %p134 = scmp.ne.s32.totalorder %s119, %s133
      %p135 = scmp.eq.s32.totalorder %s25, 0
      %p136 = por %p134, %p135
      %s138 = sadd.s32 %s137, 1
      %p141 = scmp.eq.s32.totalorder %s19, 1
      %p142 = scmp.ne.s32.totalorder %s137, %s139
      %p143 = scmp.eq.s32.totalorder %s19, 0
      %p144 = por %p142, %p143
      %p145 = scmp.ne.s32.totalorder %s137, %s139
      %p146 = scmp.eq.s32.totalorder %s24, 1
      %p147 = por %p145, %p146
      %p148 = scmp.ne.s32.totalorder %s139, %s140
      %p149 = scmp.eq.s32.totalorder %s24, 0
      %p150 = por %p148, %p149
      %p151 = scmp.ne.s32.totalorder %s139, %s140
      %p152 = scmp.eq.s32.totalorder %s25, 1
      %p153 = por %p151, %p152
      %p155 = scmp.ne.s32.totalorder %s140, %s154
      %p156 = scmp.eq.s32.totalorder %s25, 0
      %p157 = por %p155, %p156
      %s158 = ssub.s32 %s19, %s26
      %p159 = scmp.eq.s32.totalorder %s158, 0
      %s161 = sadd.s32 %s160, 1
      %s162 = scalar_select %p159, %s160, %s161
      %p165 = pneg %p159
      %p166 = scmp.eq.s32.totalorder %s19, 1
      %p167 = por %p165, %p166
      %p168 = scmp.ne.s32.totalorder %s160, %s163
      %p169 = scmp.eq.s32.totalorder %s19, 0
      %p170 = por %p168, %p169
      %p171 = scmp.ne.s32.totalorder %s160, %s163
      %p172 = scmp.eq.s32.totalorder %s24, 1
      %p173 = por %p171, %p172
      %p174 = scmp.ne.s32.totalorder %s163, %s164
      %p175 = scmp.eq.s32.totalorder %s24, 0
      %p176 = por %p174, %p175
      %p177 = scmp.ne.s32.totalorder %s163, %s164
      %p178 = scmp.eq.s32.totalorder %s25, 1
      %p179 = por %p177, %p178
      %p181 = scmp.ne.s32.totalorder %s164, %s180
      %p182 = scmp.eq.s32.totalorder %s25, 0
      %p183 = por %p181, %p182
      %p184 = scmp.le.s32.totalorder 1, %s19
      %p185 = scmp.lt.s32.totalorder %s19, 3
      %p186 = pnand %p184, %p185
      %p187 = pneg %p186
      // Predicated region
      $region9: #{tpu_custom_call.1} parent=5 // pred_check
        _
      $region10: #{tpu_custom_call.1} parent=5 // pred_check_branch
        %189 = sbr.rel (%p186) target = $region12
      $region11: #{tpu_custom_call.1} parent=5 // pred_region
        %s190 = ssub.s32 %s19, 1
        // Predicated region
        $region13: #{tpu_custom_call.1} parent=11 // pred_check
          %p191 = pneg %p66
        $region14: #{tpu_custom_call.1} parent=11 // pred_check_branch
          %193 = sbr.rel (%p191) target = $region16
        $region15: #{tpu_custom_call.1} parent=11 // pred_region
          _
        $region16: #{tpu_custom_call.1} parent=11 // pred_fallthru
          _
        // Predicated region
        $region17: #{tpu_custom_call.1} parent=11 // pred_check
          %p194 = pneg %p87
        $region18: #{tpu_custom_call.1} parent=11 // pred_check_branch
          %196 = sbr.rel (%p194) target = $region20
        $region19: #{tpu_custom_call.1} parent=11 // pred_region
          _
        $region20: #{tpu_custom_call.1} parent=11 // pred_fallthru
          _
        // Predicated region
        $region21: #{tpu_custom_call.1} parent=11 // pred_check
          %p197 = pneg %p108
        $region22: #{tpu_custom_call.1} parent=11 // pred_check_branch
          %199 = sbr.rel (%p197) target = $region24
        $region23: #{tpu_custom_call.1} parent=11 // pred_region
          %s201 = ssub.s32 6144, 6144
          %202 = vsyncadd [#allocation6], %s201
          %s203 = sshll.u32 [#allocation5], 4
          %s204 = int_to_ptr.vmem [resolvable:$true] %s203
          %209 = dma.hbm_to_vmem [thread:$0]  %s3, 6144, %s204, [#allocation6], 384, 384, 24
        $region24: #{tpu_custom_call.1} parent=11 // pred_fallthru
          _
        // Predicated region
        $region25: #{tpu_custom_call.1} parent=11 // pred_check
          %p210 = pneg %p129
        $region26: #{tpu_custom_call.1} parent=11 // pred_check_branch
          %212 = sbr.rel (%p210) target = $region28
        $region27: #{tpu_custom_call.1} parent=11 // pred_region
          %s214 = ssub.s32 2048, 2048
          %215 = vsyncadd [#allocation6], %s214
          %s216 = sshll.u32 [#allocation7], 4
          %s217 = int_to_ptr.vmem [resolvable:$true] %s216
          %222 = dma.hbm_to_vmem [thread:$0]  %s4, 2048, %s217, [#allocation6], 128, 128, 8
        $region28: #{tpu_custom_call.1} parent=11 // pred_fallthru
          _
        // Predicated region
        $region29: #{tpu_custom_call.1} parent=11 // pred_check
          %p223 = pneg %p150
        $region30: #{tpu_custom_call.1} parent=11 // pred_check_branch
          %225 = sbr.rel (%p223) target = $region32
        $region31: #{tpu_custom_call.1} parent=11 // pred_region
          _
        $region32: #{tpu_custom_call.1} parent=11 // pred_fallthru
          _
      $region12: #{tpu_custom_call.1} parent=5 // pred_fallthru
        _
      %p226 = scmp.lt.s32.totalorder %s19, 2
      // Predicated region
      $region33: #{tpu_custom_call.1} parent=5 // pred_check
        %p227 = pneg %p226
      $region34: #{tpu_custom_call.1} parent=5 // pred_check_branch
        %229 = sbr.rel (%p227) target = $region36
      $region35: #{tpu_custom_call.1} parent=5 // pred_region
        // Predicated region
        $region37: #{tpu_custom_call.1} parent=35 // pred_check
          %p230 = pneg %p39
        $region38: #{tpu_custom_call.1} parent=35 // pred_check_branch
          %232 = sbr.rel (%p230) target = $region40
        $region39: #{tpu_custom_call.1} parent=35 // pred_region
          %s233 = sand.u32 %s29, 1
          %s234 = scalar_lea.sflag [#allocation3], %s233
          %s235 = sand.u32 %s29, 1
          %s236 = smul.addr %s235, 8
          %s237 = scalar_lea.vmem [#allocation2], %s236
          %s239 = ssub.s32 128, 128
          %240 = vsyncadd %s234, %s239
          %s241 = smul.addr %s19, 128
          %s242 = scalar_lea.hbm %s0, %s241
          %s244 = sshll.u32 %s237, 4
          %s245 = int_to_ptr.vmem [resolvable:$true] %s244
          %247 = dma.hbm_to_vmem [thread:$0]  %s242, 128, %s245, %s234
        $region40: #{tpu_custom_call.1} parent=35 // pred_fallthru
          _
      $region36: #{tpu_custom_call.1} parent=5 // pred_fallthru
        _
      %p248 = scmp.le.s32.totalorder 1, %s19
      %p249 = scmp.lt.s32.totalorder %s19, 3
      %p250 = pnand %p248, %p249
      %p251 = pneg %p250
      // Predicated region
      $region41: #{tpu_custom_call.1} parent=5 // pred_check
        _
      $region42: #{tpu_custom_call.1} parent=5 // pred_check_branch
        %253 = sbr.rel (%p250) target = $region44
      $region43: #{tpu_custom_call.1} parent=5 // pred_region
        %s254 = ssub.s32 %s19, 1
        %s255 = sand.u32 %s32, 1
        %s256 = scalar_lea.sflag [#allocation3], %s255
        %s257 = sand.u32 %s32, 1
        %s258 = smul.addr %s257, 8
        %s259 = scalar_lea.vmem [#allocation2], %s258
        // Predicated region
        $region45: #{tpu_custom_call.1} parent=43 // pred_check
          %p260 = pneg %p45
        $region46: #{tpu_custom_call.1} parent=43 // pred_check_branch
          %262 = sbr.rel (%p260) target = $region48
        $region47: #{tpu_custom_call.1} parent=43 // pred_region
          %263 = dma.done %s256, 128
        $region48: #{tpu_custom_call.1} parent=43 // pred_fallthru
          _
        // Predicated region
        $region49: #{tpu_custom_call.1} parent=43 // pred_check
          %p264 = pneg %p108
        $region50: #{tpu_custom_call.1} parent=43 // pred_check_branch
          %266 = sbr.rel (%p264) target = $region52
        $region51: #{tpu_custom_call.1} parent=43 // pred_region
          %267 = dma.done [#allocation6], 6144
        $region52: #{tpu_custom_call.1} parent=43 // pred_fallthru
          _
        // Predicated region
        $region53: #{tpu_custom_call.1} parent=43 // pred_check
          %p268 = pneg %p129
        $region54: #{tpu_custom_call.1} parent=43 // pred_check_branch
          %270 = sbr.rel (%p268) target = $region56
        $region55: #{tpu_custom_call.1} parent=43 // pred_region
          %271 = dma.done [#allocation6], 2048
        $region56: #{tpu_custom_call.1} parent=43 // pred_fallthru
          _
        %s272 = sand.u32 %s32, 1
        %s273 = scalar_lea.sflag [#allocation3], %s272
        %s274 = sand.u32 %s32, 1
        %s275 = smul.addr %s274, 8
        %s276 = scalar_lea.vmem [#allocation2], %s275
        %p277 = pneg %p45
        %p278 = pneg %p42
        %p279 = pneg %p66
        %p280 = pneg %p63
        %p281 = pneg %p87
        %p282 = pneg %p84
        %p283 = pneg %p108
        %p284 = pneg %p105
        %p285 = pneg %p129
        %p286 = pneg %p126
        %p287 = pneg %p150
        %p288 = pneg %p147
        %p289 = pneg %p176
        %p290 = pneg %p173
        %s291 = sand.u32 %s163, 1
        %s292 = scalar_lea.sflag [#allocation4], %s291
        %s293 = sand.u32 %s163, 1
        %s294 = smul.addr %s293, 8
        %s295 = scalar_lea.vmem [#allocation8], %s294
        %v296 = vld [vmem:[%s259] sm:$0xff]
        %v297 = vld [vmem:[%s1] sm:$0x1]
        %v298 = vld [vmem:[%s2] sm:$0x1]
        %299 = vadd.xlane.f32.xlu0 %v296
        %v300 = vpop.xlane.xlu0 %299
        %v301 = vrcp.pop 128.0
        %v302 = vmul.f32 %v300, %v301
        %v303 = vsub.f32 %v296, %v302
        %v304 = vmul.f32 %v303, %v303
        %305 = vadd.xlane.f32.xlu0 %v304
        %v306 = vpop.xlane.xlu0 %305
        %v307 = vmul.f32 %v306, %v301
        %v308 = vadd.f32 %v307, 1e-05
        %v309 = vrsqrt.pop %v308
        %v310 = vmul.f32 %v303, %v309
        %v312 = vlaneseq
        %v313 = vshrl.u32 %v312, 7
        %v314 = vsub.s32 0, %v313
        %v315 = vrot.slane %v297, %v314
        %v317 = vmul.f32 %v310, %v315
        %v319 = vlaneseq
        %v320 = vshrl.u32 %v319, 7
        %v321 = vsub.s32 0, %v320
        %v322 = vrot.slane %v298, %v321
        %v324 = vadd.f32 %v317, %v322
        %v325 = vld [vmem:[#allocation5] sm:$0xff]
        %v326 = vld [vmem:[#allocation5 + $0x8] sm:$0xff]
        %v327 = vld [vmem:[#allocation5 + $0x10] sm:$0xff]
        %v328 = vld [vmem:[#allocation5 + $0x18] sm:$0xff]
        %v329 = vld [vmem:[#allocation5 + $0x20] sm:$0xff]
        %v330 = vld [vmem:[#allocation5 + $0x28] sm:$0xff]
        %v331 = vld [vmem:[#allocation5 + $0x30] sm:$0xff]
        %v332 = vld [vmem:[#allocation5 + $0x38] sm:$0xff]
        %v333 = vld [vmem:[#allocation5 + $0x40] sm:$0xff]
        %v334 = vld [vmem:[#allocation5 + $0x48] sm:$0xff]
        %v335 = vld [vmem:[#allocation5 + $0x50] sm:$0xff]
        %v336 = vld [vmem:[#allocation5 + $0x58] sm:$0xff]
        %v337 = vld [vmem:[#allocation5 + $0x60] sm:$0xff]
        %v338 = vld [vmem:[#allocation5 + $0x68] sm:$0xff]
        %v339 = vld [vmem:[#allocation5 + $0x70] sm:$0xff]
        %v340 = vld [vmem:[#allocation5 + $0x78] sm:$0xff]
        %v341 = vld [vmem:[#allocation5 + $0x80] sm:$0xff]
        %v342 = vld [vmem:[#allocation5 + $0x88] sm:$0xff]
        %v343 = vld [vmem:[#allocation5 + $0x90] sm:$0xff]
        %v344 = vld [vmem:[#allocation5 + $0x98] sm:$0xff]
        %v345 = vld [vmem:[#allocation5 + $0xa0] sm:$0xff]
        %v346 = vld [vmem:[#allocation5 + $0xa8] sm:$0xff]
        %v347 = vld [vmem:[#allocation5 + $0xb0] sm:$0xff]
        %v348 = vld [vmem:[#allocation5 + $0xb8] sm:$0xff]
        %v349 = vld [vmem:[#allocation5 + $0xc0] sm:$0xff]
        %v350 = vld [vmem:[#allocation5 + $0xc8] sm:$0xff]
        %v351 = vld [vmem:[#allocation5 + $0xd0] sm:$0xff]
        %v352 = vld [vmem:[#allocation5 + $0xd8] sm:$0xff]
        %v353 = vld [vmem:[#allocation5 + $0xe0] sm:$0xff]
        %v354 = vld [vmem:[#allocation5 + $0xe8] sm:$0xff]
        %v355 = vld [vmem:[#allocation5 + $0xf0] sm:$0xff]
        %v356 = vld [vmem:[#allocation5 + $0xf8] sm:$0xff]
        %v357 = vld [vmem:[#allocation5 + $0x100] sm:$0xff]
        %v358 = vld [vmem:[#allocation5 + $0x108] sm:$0xff]
        %v359 = vld [vmem:[#allocation5 + $0x110] sm:$0xff]
        %v360 = vld [vmem:[#allocation5 + $0x118] sm:$0xff]
        %v361 = vld [vmem:[#allocation5 + $0x120] sm:$0xff]
        %v362 = vld [vmem:[#allocation5 + $0x128] sm:$0xff]
        %v363 = vld [vmem:[#allocation5 + $0x130] sm:$0xff]
        %v364 = vld [vmem:[#allocation5 + $0x138] sm:$0xff]
        %v365 = vld [vmem:[#allocation5 + $0x140] sm:$0xff]
        %v366 = vld [vmem:[#allocation5 + $0x148] sm:$0xff]
        %v367 = vld [vmem:[#allocation5 + $0x150] sm:$0xff]
        %v368 = vld [vmem:[#allocation5 + $0x158] sm:$0xff]
        %v369 = vld [vmem:[#allocation5 + $0x160] sm:$0xff]
        %v370 = vld [vmem:[#allocation5 + $0x168] sm:$0xff]
        %v371 = vld [vmem:[#allocation5 + $0x170] sm:$0xff]
        %v372 = vld [vmem:[#allocation5 + $0x178] sm:$0xff]
        %373 = vmatprep.subr.mxu0 %v371
        %374 = vmatpush1.msra.mxu0 %v370
        %375 = vmatprep.subr.mxu0 %v368
        %376 = vmatpush1.msra.mxu0 %v367
        %377 = vmatprep.subr.mxu0 %v365
        %378 = vmatpush1.msra.mxu0 %v364
        %379 = vmatprep.subr.mxu0 %v362
        %380 = vmatpush1.msra.mxu0 %v361
        %381 = vmatprep.subr.mxu0 %v359
        %382 = vmatpush1.msra.mxu0 %v358
        %383 = vmatprep.subr.mxu0 %v356
        %384 = vmatpush1.msra.mxu0 %v355
        %385 = vmatprep.subr.mxu0 %v353
        %386 = vmatpush1.msra.mxu0 %v352
        %387 = vmatprep.subr.mxu0 %v350
        %388 = vmatpush1.msra.mxu0 %v349
        %389 = vmatprep.subr.mxu0 %v347
        %390 = vmatpush1.msra.mxu0 %v346
        %391 = vmatprep.subr.mxu0 %v344
        %392 = vmatpush1.msra.mxu0 %v343
        %393 = vmatprep.subr.mxu0 %v341
        %394 = vmatpush1.msra.mxu0 %v340
        %395 = vmatprep.subr.mxu0 %v338
        %396 = vmatpush1.msra.mxu0 %v337
        %397 = vmatprep.subr.mxu0 %v335
        %398 = vmatpush1.msra.mxu0 %v334
        %399 = vmatprep.subr.mxu0 %v332
        %400 = vmatpush1.msra.mxu0 %v331
        %401 = vmatprep.subr.mxu0 %v329
        %402 = vmatpush1.msra.mxu0 %v328
        %403 = vmatprep.subr.mxu0 %v326
        %404 = vmatpush1.msra.mxu0 %v325
        %405 = vmatprep.subr.mxu0 0.0
        %406 = vmatpush2.msra.mxu0 0.0
        %407 = vmatprep.subr.mxu0 0.0
        %408 = vmatpush2.msra.mxu0 0.0
        %409 = vmatprep.subr.mxu0 0.0
        %410 = vmatpush2.msra.mxu0 0.0
        %411 = vmatprep.subr.mxu0 0.0
        %412 = vmatpush2.msra.mxu0 0.0
        %413 = vmatprep.subr.mxu0 0.0
        %414 = vmatpush2.msra.mxu0 0.0
        %415 = vmatprep.subr.mxu0 0.0
        %416 = vmatpush2.msra.mxu0 0.0
        %417 = vmatprep.subr.mxu0 0.0
        %418 = vmatpush2.msra.mxu0 0.0
        %419 = vmatprep.subr.mxu0 0.0
        %420 = vmatpush2.msra.mxu0 0.0
        %421 = vmatprep.subr.mxu0 0.0
        %422 = vmatpush2.msra.mxu0 0.0
        %423 = vmatprep.subr.mxu0 0.0
        %424 = vmatpush2.msra.mxu0 0.0
        %425 = vmatprep.subr.mxu0 0.0
        %426 = vmatpush2.msra.mxu0 0.0
        %427 = vmatprep.subr.mxu0 0.0
        %428 = vmatpush2.msra.mxu0 0.0
        %429 = vmatprep.subr.mxu0 0.0
        %430 = vmatpush2.msra.mxu0 0.0
        %431 = vmatprep.subr.mxu0 0.0
        %432 = vmatpush2.msra.mxu0 0.0
        %433 = vmatprep.subr.mxu0 0.0
        %434 = vmatpush2.msra.mxu0 0.0
        %435 = vmatprep.subr.mxu0 0.0
        %436 = vmatpush2.msra.mxu0 0.0
        %437 = vmatprep.mubr.f32.mxu0 0.0
        %438 = vmatmul.mubr.f32.gmra.mxu0 %v324
        %v439 = vpop.f32.mrf.mxu0
        %v440 = vadd.f32 0.0, %v439
        %v441 = vpop.f32.mrf.mxu0
        %v442 = vadd.f32 0.0, %v441
        %443 = vdwg.mxu0
        %444 = vmatprep.subr.mxu0 0.0
        %445 = vmatpush1.msra.mxu0 %v372
        %446 = vmatprep.subr.mxu0 0.0
        %447 = vmatpush1.msra.mxu0 %v369
        %448 = vmatprep.subr.mxu0 0.0
        %449 = vmatpush1.msra.mxu0 %v366
        %450 = vmatprep.subr.mxu0 0.0
        %451 = vmatpush1.msra.mxu0 %v363
        %452 = vmatprep.subr.mxu0 0.0
        %453 = vmatpush1.msra.mxu0 %v360
        %454 = vmatprep.subr.mxu0 0.0
        %455 = vmatpush1.msra.mxu0 %v357
        %456 = vmatprep.subr.mxu0 0.0
        %457 = vmatpush1.msra.mxu0 %v354
        %458 = vmatprep.subr.mxu0 0.0
        %459 = vmatpush1.msra.mxu0 %v351
        %460 = vmatprep.subr.mxu0 0.0
        %461 = vmatpush1.msra.mxu0 %v348
        %462 = vmatprep.subr.mxu0 0.0
        %463 = vmatpush1.msra.mxu0 %v345
        %464 = vmatprep.subr.mxu0 0.0
        %465 = vmatpush1.msra.mxu0 %v342
        %466 = vmatprep.subr.mxu0 0.0
        %467 = vmatpush1.msra.mxu0 %v339
        %468 = vmatprep.subr.mxu0 0.0
        %469 = vmatpush1.msra.mxu0 %v336
        %470 = vmatprep.subr.mxu0 0.0
        %471 = vmatpush1.msra.mxu0 %v333
        %472 = vmatprep.subr.mxu0 0.0
        %473 = vmatpush1.msra.mxu0 %v330
        %474 = vmatprep.subr.mxu0 0.0
        %475 = vmatpush1.msra.mxu0 %v327
        %476 = vmatprep.subr.mxu0 0.0
        %477 = vmatpush2.msra.mxu0 0.0
        %478 = vmatprep.subr.mxu0 0.0
        %479 = vmatpush2.msra.mxu0 0.0
        %480 = vmatprep.subr.mxu0 0.0
        %481 = vmatpush2.msra.mxu0 0.0
        %482 = vmatprep.subr.mxu0 0.0
        %483 = vmatpush2.msra.mxu0 0.0
        %484 = vmatprep.subr.mxu0 0.0
        %485 = vmatpush2.msra.mxu0 0.0
        %486 = vmatprep.subr.mxu0 0.0
        %487 = vmatpush2.msra.mxu0 0.0
        %488 = vmatprep.subr.mxu0 0.0
        %489 = vmatpush2.msra.mxu0 0.0
        %490 = vmatprep.subr.mxu0 0.0
        %491 = vmatpush2.msra.mxu0 0.0
        %492 = vmatprep.subr.mxu0 0.0
        %493 = vmatpush2.msra.mxu0 0.0
        %494 = vmatprep.subr.mxu0 0.0
        %495 = vmatpush2.msra.mxu0 0.0
        %496 = vmatprep.subr.mxu0 0.0
        %497 = vmatpush2.msra.mxu0 0.0
        %498 = vmatprep.subr.mxu0 0.0
        %499 = vmatpush2.msra.mxu0 0.0
        %500 = vmatprep.subr.mxu0 0.0
        %501 = vmatpush2.msra.mxu0 0.0
        %502 = vmatprep.subr.mxu0 0.0
        %503 = vmatpush2.msra.mxu0 0.0
        %504 = vmatprep.subr.mxu0 0.0
        %505 = vmatpush2.msra.mxu0 0.0
        %506 = vmatprep.subr.mxu0 0.0
        %507 = vmatpush2.msra.mxu0 0.0
        %508 = vmatprep.mubr.f32.mxu0 0.0
        %509 = vmatmul.mubr.f32.gmra.mxu0 %v324
        %v510 = vpop.f32.mrf.mxu0
        %v511 = vadd.f32 0.0, %v510
        %v512 = vpop.f32.mrf.mxu0
        %513 = vdwg.mxu0
        %v514 = vmul.f32 %v440, 0.088388346
        %vm515 = vcmask 261120
        %v517 = vsel %vm515, %v514, 0
        %v520 = vsel %vm515, %v442, 0
        %522 = vmatprep.subr.mxu0 0.0
        %523 = vmatpush1.xpose.msra.mxu0 0.0
        %524 = vmatprep.subr.mxu0 0.0
        %525 = vmatpush1.xpose.msra.mxu0 0.0
        %526 = vmatprep.subr.mxu0 0.0
        %527 = vmatpush1.xpose.msra.mxu0 0.0
        %528 = vmatprep.subr.mxu0 0.0
        %529 = vmatpush1.xpose.msra.mxu0 0.0
        %530 = vmatprep.subr.mxu0 0.0
        %531 = vmatpush1.xpose.msra.mxu0 0.0
        %532 = vmatprep.subr.mxu0 0.0
        %533 = vmatpush1.xpose.msra.mxu0 0.0
        %534 = vmatprep.subr.mxu0 0.0
        %535 = vmatpush1.xpose.msra.mxu0 0.0
        %536 = vmatprep.subr.mxu0 0.0
        %537 = vmatpush1.xpose.msra.mxu0 0.0
        %538 = vmatprep.subr.mxu0 0.0
        %539 = vmatpush1.xpose.msra.mxu0 0.0
        %540 = vmatprep.subr.mxu0 0.0
        %541 = vmatpush1.xpose.msra.mxu0 0.0
        %542 = vmatprep.subr.mxu0 0.0
        %543 = vmatpush1.xpose.msra.mxu0 0.0
        %544 = vmatprep.subr.mxu0 0.0
        %545 = vmatpush1.xpose.msra.mxu0 0.0
        %546 = vmatprep.subr.mxu0 0.0
        %547 = vmatpush1.xpose.msra.mxu0 0.0
        %548 = vmatprep.subr.mxu0 0.0
        %549 = vmatpush1.xpose.msra.mxu0 0.0
        %550 = vmatprep.subr.mxu0 0.0
        %551 = vmatpush1.xpose.msra.mxu0 0.0
        %552 = vmatprep.subr.mxu0 0.0
        %553 = vmatpush1.xpose.msra.mxu0 %v520
        %554 = vmatprep.subr.mxu0 0.0
        %555 = vmatpush2.xpose.msra.mxu0 0.0
        %556 = vmatprep.subr.mxu0 0.0
        %557 = vmatpush2.xpose.msra.mxu0 0.0
        %558 = vmatprep.subr.mxu0 0.0
        %559 = vmatpush2.xpose.msra.mxu0 0.0
        %560 = vmatprep.subr.mxu0 0.0
        %561 = vmatpush2.xpose.msra.mxu0 0.0
        %562 = vmatprep.subr.mxu0 0.0
        %563 = vmatpush2.xpose.msra.mxu0 0.0
        %564 = vmatprep.subr.mxu0 0.0
        %565 = vmatpush2.xpose.msra.mxu0 0.0
        %566 = vmatprep.subr.mxu0 0.0
        %567 = vmatpush2.xpose.msra.mxu0 0.0
        %568 = vmatprep.subr.mxu0 0.0
        %569 = vmatpush2.xpose.msra.mxu0 0.0
        %570 = vmatprep.subr.mxu0 0.0
        %571 = vmatpush2.xpose.msra.mxu0 0.0
        %572 = vmatprep.subr.mxu0 0.0
        %573 = vmatpush2.xpose.msra.mxu0 0.0
        %574 = vmatprep.subr.mxu0 0.0
        %575 = vmatpush2.xpose.msra.mxu0 0.0
        %576 = vmatprep.subr.mxu0 0.0
        %577 = vmatpush2.xpose.msra.mxu0 0.0
        %578 = vmatprep.subr.mxu0 0.0
        %579 = vmatpush2.xpose.msra.mxu0 0.0
        %580 = vmatprep.subr.mxu0 0.0
        %581 = vmatpush2.xpose.msra.mxu0 0.0
        %582 = vmatprep.subr.mxu0 0.0
        %583 = vmatpush2.xpose.msra.mxu0 0.0
        %584 = vmatprep.subr.mxu0 0.0
        %585 = vmatpush2.xpose.msra.mxu0 0.0
        %586 = vmatprep.mubr.f32.mxu0 0.0
        %587 = vmatmul.mubr.f32.gmra.mxu0 %v517
        %v588 = vpop.f32.mrf.mxu0
        %v589 = vadd.f32 0.0, %v588
        %v590 = vpop.f32.mrf.mxu0
        %591 = vdwg.mxu0
        %vm592 = vcmask 64512
        %v593 = vsel %vm592, %v589, -inf
        %594 = vmax.xlane.f32.xlu0 %v593
        %v595 = vpop.xlane.xlu0 %594
        %v596 = vsub.f32 %v589, %v595
        %v597 = vmul.f32 %v596, 1.442695
        %v598 = vpow.pop %v597
        %v599 = vsel %vm592, %v598, 0.0
        %600 = vadd.xlane.f32.xlu0 %v599
        %v601 = vpop.xlane.xlu0 %600
        %v602 = vrcp.pop %v601
        %v603 = vmul.f32 %v598, %v602
        %v605 = vsel %vm592, %v603, 0
        %607 = vmatprep.subr.mxu0 0.0
        %608 = vmatpush1.msra.mxu0 0.0
        %609 = vmatprep.subr.mxu0 0.0
        %610 = vmatpush1.msra.mxu0 0.0
        %611 = vmatprep.subr.mxu0 0.0
        %612 = vmatpush1.msra.mxu0 0.0
        %613 = vmatprep.subr.mxu0 0.0
        %614 = vmatpush1.msra.mxu0 0.0
        %615 = vmatprep.subr.mxu0 0.0
        %616 = vmatpush1.msra.mxu0 0.0
        %617 = vmatprep.subr.mxu0 0.0
        %618 = vmatpush1.msra.mxu0 0.0
        %619 = vmatprep.subr.mxu0 0.0
        %620 = vmatpush1.msra.mxu0 0.0
        %621 = vmatprep.subr.mxu0 0.0
        %622 = vmatpush1.msra.mxu0 0.0
        %623 = vmatprep.subr.mxu0 0.0
        %624 = vmatpush1.msra.mxu0 0.0
        %625 = vmatprep.subr.mxu0 0.0
        %626 = vmatpush1.msra.mxu0 0.0
        %627 = vmatprep.subr.mxu0 0.0
        %628 = vmatpush1.msra.mxu0 0.0
        %629 = vmatprep.subr.mxu0 0.0
        %630 = vmatpush1.msra.mxu0 0.0
        %631 = vmatprep.subr.mxu0 0.0
        %632 = vmatpush1.msra.mxu0 0.0
        %633 = vmatprep.subr.mxu0 0.0
        %634 = vmatpush1.msra.mxu0 0.0
        %635 = vmatprep.subr.mxu0 0.0
        %636 = vmatpush1.msra.mxu0 0.0
        %637 = vmatprep.subr.mxu0 0.0
        %638 = vmatpush1.msra.mxu0 %v511
        %639 = vmatprep.subr.mxu0 0.0
        %640 = vmatpush2.msra.mxu0 0.0
        %641 = vmatprep.subr.mxu0 0.0
        %642 = vmatpush2.msra.mxu0 0.0
        %643 = vmatprep.subr.mxu0 0.0
        %644 = vmatpush2.msra.mxu0 0.0
        %645 = vmatprep.subr.mxu0 0.0
        %646 = vmatpush2.msra.mxu0 0.0
        %647 = vmatprep.subr.mxu0 0.0
        %648 = vmatpush2.msra.mxu0 0.0
        %649 = vmatprep.subr.mxu0 0.0
        %650 = vmatpush2.msra.mxu0 0.0
        %651 = vmatprep.subr.mxu0 0.0
        %652 = vmatpush2.msra.mxu0 0.0
        %653 = vmatprep.subr.mxu0 0.0
        %654 = vmatpush2.msra.mxu0 0.0
        %655 = vmatprep.subr.mxu0 0.0
        %656 = vmatpush2.msra.mxu0 0.0
        %657 = vmatprep.subr.mxu0 0.0
        %658 = vmatpush2.msra.mxu0 0.0
        %659 = vmatprep.subr.mxu0 0.0
        %660 = vmatpush2.msra.mxu0 0.0
        %661 = vmatprep.subr.mxu0 0.0
        %662 = vmatpush2.msra.mxu0 0.0
        %663 = vmatprep.subr.mxu0 0.0
        %664 = vmatpush2.msra.mxu0 0.0
        %665 = vmatprep.subr.mxu0 0.0
        %666 = vmatpush2.msra.mxu0 0.0
        %667 = vmatprep.subr.mxu0 0.0
        %668 = vmatpush2.msra.mxu0 0.0
        %669 = vmatprep.subr.mxu0 0.0
        %670 = vmatpush2.msra.mxu0 0.0
        %671 = vmatprep.mubr.f32.mxu0 0.0
        %672 = vmatmul.mubr.f32.gmra.mxu0 %v605
        %v673 = vpop.f32.mrf.mxu0
        %v674 = vadd.f32 0.0, %v673
        %v675 = vpop.f32.mrf.mxu0
        %676 = vdwg.mxu0
        %677 = vrot.lane.b32.xlu0 %v514, 96
        %v678 = vpop.permute.xlu0 %677
        %679 = vrot.lane.b32.xlu0 %v442, 96
        %v680 = vpop.permute.xlu0 %679
        %v681 = vsel %vm515, %v678, 0
        %v683 = vsel %vm515, %v680, 0
        %685 = vmatprep.subr.mxu0 0.0
        %686 = vmatpush1.xpose.msra.mxu0 0.0
        %687 = vmatprep.subr.mxu0 0.0
        %688 = vmatpush1.xpose.msra.mxu0 0.0
        %689 = vmatprep.subr.mxu0 0.0
        %690 = vmatpush1.xpose.msra.mxu0 0.0
        %691 = vmatprep.subr.mxu0 0.0
        %692 = vmatpush1.xpose.msra.mxu0 0.0
        %693 = vmatprep.subr.mxu0 0.0
        %694 = vmatpush1.xpose.msra.mxu0 0.0
        %695 = vmatprep.subr.mxu0 0.0
        %696 = vmatpush1.xpose.msra.mxu0 0.0
        %697 = vmatprep.subr.mxu0 0.0
        %698 = vmatpush1.xpose.msra.mxu0 0.0
        %699 = vmatprep.subr.mxu0 0.0
        %700 = vmatpush1.xpose.msra.mxu0 0.0
        %701 = vmatprep.subr.mxu0 0.0
        %702 = vmatpush1.xpose.msra.mxu0 0.0
        %703 = vmatprep.subr.mxu0 0.0
        %704 = vmatpush1.xpose.msra.mxu0 0.0
        %705 = vmatprep.subr.mxu0 0.0
        %706 = vmatpush1.xpose.msra.mxu0 0.0
        %707 = vmatprep.subr.mxu0 0.0
        %708 = vmatpush1.xpose.msra.mxu0 0.0
        %709 = vmatprep.subr.mxu0 0.0
        %710 = vmatpush1.xpose.msra.mxu0 0.0
        %711 = vmatprep.subr.mxu0 0.0
        %712 = vmatpush1.xpose.msra.mxu0 0.0
        %713 = vmatprep.subr.mxu0 0.0
        %714 = vmatpush1.xpose.msra.mxu0 0.0
        %715 = vmatprep.subr.mxu0 0.0
        %716 = vmatpush1.xpose.msra.mxu0 %v683
        %717 = vmatprep.subr.mxu0 0.0
        %718 = vmatpush2.xpose.msra.mxu0 0.0
        %719 = vmatprep.subr.mxu0 0.0
        %720 = vmatpush2.xpose.msra.mxu0 0.0
        %721 = vmatprep.subr.mxu0 0.0
        %722 = vmatpush2.xpose.msra.mxu0 0.0
        %723 = vmatprep.subr.mxu0 0.0
        %724 = vmatpush2.xpose.msra.mxu0 0.0
        %725 = vmatprep.subr.mxu0 0.0
        %726 = vmatpush2.xpose.msra.mxu0 0.0
        %727 = vmatprep.subr.mxu0 0.0
        %728 = vmatpush2.xpose.msra.mxu0 0.0
        %729 = vmatprep.subr.mxu0 0.0
        %730 = vmatpush2.xpose.msra.mxu0 0.0
        %731 = vmatprep.subr.mxu0 0.0
        %732 = vmatpush2.xpose.msra.mxu0 0.0
        %733 = vmatprep.subr.mxu0 0.0
        %734 = vmatpush2.xpose.msra.mxu0 0.0
        %735 = vmatprep.subr.mxu0 0.0
        %736 = vmatpush2.xpose.msra.mxu0 0.0
        %737 = vmatprep.subr.mxu0 0.0
        %738 = vmatpush2.xpose.msra.mxu0 0.0
        %739 = vmatprep.subr.mxu0 0.0
        %740 = vmatpush2.xpose.msra.mxu0 0.0
        %741 = vmatprep.subr.mxu0 0.0
        %742 = vmatpush2.xpose.msra.mxu0 0.0
        %743 = vmatprep.subr.mxu0 0.0
        %744 = vmatpush2.xpose.msra.mxu0 0.0
        %745 = vmatprep.subr.mxu0 0.0
        %746 = vmatpush2.xpose.msra.mxu0 0.0
        %747 = vmatprep.subr.mxu0 0.0
        %748 = vmatpush2.xpose.msra.mxu0 0.0
        %749 = vmatprep.mubr.f32.mxu0 0.0
        %750 = vmatmul.mubr.f32.gmra.mxu0 %v681
        %v751 = vpop.f32.mrf.mxu0
        %v752 = vadd.f32 0.0, %v751
        %v753 = vpop.f32.mrf.mxu0
        %754 = vdwg.mxu0
        %v755 = vsel %vm592, %v752, -inf
        %756 = vmax.xlane.f32.xlu0 %v755
        %v757 = vpop.xlane.xlu0 %756
        %v758 = vsub.f32 %v752, %v757
        %v759 = vmul.f32 %v758, 1.442695
        %v760 = vpow.pop %v759
        %v761 = vsel %vm592, %v760, 0.0
        %762 = vadd.xlane.f32.xlu0 %v761
        %v763 = vpop.xlane.xlu0 %762
        %v764 = vrcp.pop %v763
        %v765 = vmul.f32 %v760, %v764
        %767 = vrot.lane.b32.xlu0 %v511, 96
        %v768 = vpop.permute.xlu0 %767
        %v771 = vsel %vm592, %v765, 0
        %773 = vmatprep.subr.mxu0 0.0
        %774 = vmatpush1.msra.mxu0 0.0
        %775 = vmatprep.subr.mxu0 0.0
        %776 = vmatpush1.msra.mxu0 0.0
        %777 = vmatprep.subr.mxu0 0.0
        %778 = vmatpush1.msra.mxu0 0.0
        %779 = vmatprep.subr.mxu0 0.0
        %780 = vmatpush1.msra.mxu0 0.0
        %781 = vmatprep.subr.mxu0 0.0
        %782 = vmatpush1.msra.mxu0 0.0
        %783 = vmatprep.subr.mxu0 0.0
        %784 = vmatpush1.msra.mxu0 0.0
        %785 = vmatprep.subr.mxu0 0.0
        %786 = vmatpush1.msra.mxu0 0.0
        %787 = vmatprep.subr.mxu0 0.0
        %788 = vmatpush1.msra.mxu0 0.0
        %789 = vmatprep.subr.mxu0 0.0
        %790 = vmatpush1.msra.mxu0 0.0
        %791 = vmatprep.subr.mxu0 0.0
        %792 = vmatpush1.msra.mxu0 0.0
        %793 = vmatprep.subr.mxu0 0.0
        %794 = vmatpush1.msra.mxu0 0.0
        %795 = vmatprep.subr.mxu0 0.0
        %796 = vmatpush1.msra.mxu0 0.0
        %797 = vmatprep.subr.mxu0 0.0
        %798 = vmatpush1.msra.mxu0 0.0
        %799 = vmatprep.subr.mxu0 0.0
        %800 = vmatpush1.msra.mxu0 0.0
        %801 = vmatprep.subr.mxu0 0.0
        %802 = vmatpush1.msra.mxu0 0.0
        %803 = vmatprep.subr.mxu0 0.0
        %804 = vmatpush1.msra.mxu0 %v768
        %805 = vmatprep.subr.mxu0 0.0
        %806 = vmatpush2.msra.mxu0 0.0
        %807 = vmatprep.subr.mxu0 0.0
        %808 = vmatpush2.msra.mxu0 0.0
        %809 = vmatprep.subr.mxu0 0.0
        %810 = vmatpush2.msra.mxu0 0.0
        %811 = vmatprep.subr.mxu0 0.0
        %812 = vmatpush2.msra.mxu0 0.0
        %813 = vmatprep.subr.mxu0 0.0
        %814 = vmatpush2.msra.mxu0 0.0
        %815 = vmatprep.subr.mxu0 0.0
        %816 = vmatpush2.msra.mxu0 0.0
        %817 = vmatprep.subr.mxu0 0.0
        %818 = vmatpush2.msra.mxu0 0.0
        %819 = vmatprep.subr.mxu0 0.0
        %820 = vmatpush2.msra.mxu0 0.0
        %821 = vmatprep.subr.mxu0 0.0
        %822 = vmatpush2.msra.mxu0 0.0
        %823 = vmatprep.subr.mxu0 0.0
        %824 = vmatpush2.msra.mxu0 0.0
        %825 = vmatprep.subr.mxu0 0.0
        %826 = vmatpush2.msra.mxu0 0.0
        %827 = vmatprep.subr.mxu0 0.0
        %828 = vmatpush2.msra.mxu0 0.0
        %829 = vmatprep.subr.mxu0 0.0
        %830 = vmatpush2.msra.mxu0 0.0
        %831 = vmatprep.subr.mxu0 0.0
        %832 = vmatpush2.msra.mxu0 0.0
        %833 = vmatprep.subr.mxu0 0.0
        %834 = vmatpush2.msra.mxu0 0.0
        %835 = vmatprep.subr.mxu0 0.0
        %836 = vmatpush2.msra.mxu0 0.0
        %837 = vmatprep.mubr.f32.mxu0 0.0
        %838 = vmatmul.mubr.f32.gmra.mxu0 %v771
        %v839 = vpop.f32.mrf.mxu0
        %v840 = vadd.f32 0.0, %v839
        %v841 = vpop.f32.mrf.mxu0
        %842 = vdwg.mxu0
        %843 = vrot.lane.b32.xlu0 %v514, 64
        %v844 = vpop.permute.xlu0 %843
        %845 = vrot.lane.b32.xlu0 %v442, 64
        %v846 = vpop.permute.xlu0 %845
        %v847 = vsel %vm515, %v844, 0
        %v849 = vsel %vm515, %v846, 0
        %851 = vmatprep.subr.mxu0 0.0
        %852 = vmatpush1.xpose.msra.mxu0 0.0
        %853 = vmatprep.subr.mxu0 0.0
        %854 = vmatpush1.xpose.msra.mxu0 0.0
        %855 = vmatprep.subr.mxu0 0.0
        %856 = vmatpush1.xpose.msra.mxu0 0.0
        %857 = vmatprep.subr.mxu0 0.0
        %858 = vmatpush1.xpose.msra.mxu0 0.0
        %859 = vmatprep.subr.mxu0 0.0
        %860 = vmatpush1.xpose.msra.mxu0 0.0
        %861 = vmatprep.subr.mxu0 0.0
        %862 = vmatpush1.xpose.msra.mxu0 0.0
        %863 = vmatprep.subr.mxu0 0.0
        %864 = vmatpush1.xpose.msra.mxu0 0.0
        %865 = vmatprep.subr.mxu0 0.0
        %866 = vmatpush1.xpose.msra.mxu0 0.0
        %867 = vmatprep.subr.mxu0 0.0
        %868 = vmatpush1.xpose.msra.mxu0 0.0
        %869 = vmatprep.subr.mxu0 0.0
        %870 = vmatpush1.xpose.msra.mxu0 0.0
        %871 = vmatprep.subr.mxu0 0.0
        %872 = vmatpush1.xpose.msra.mxu0 0.0
        %873 = vmatprep.subr.mxu0 0.0
        %874 = vmatpush1.xpose.msra.mxu0 0.0
        %875 = vmatprep.subr.mxu0 0.0
        %876 = vmatpush1.xpose.msra.mxu0 0.0
        %877 = vmatprep.subr.mxu0 0.0
        %878 = vmatpush1.xpose.msra.mxu0 0.0
        %879 = vmatprep.subr.mxu0 0.0
        %880 = vmatpush1.xpose.msra.mxu0 0.0
        %881 = vmatprep.subr.mxu0 0.0
        %882 = vmatpush1.xpose.msra.mxu0 %v849
        %883 = vmatprep.subr.mxu0 0.0
        %884 = vmatpush2.xpose.msra.mxu0 0.0
        %885 = vmatprep.subr.mxu0 0.0
        %886 = vmatpush2.xpose.msra.mxu0 0.0
        %887 = vmatprep.subr.mxu0 0.0
        %888 = vmatpush2.xpose.msra.mxu0 0.0
        %889 = vmatprep.subr.mxu0 0.0
        %890 = vmatpush2.xpose.msra.mxu0 0.0
        %891 = vmatprep.subr.mxu0 0.0
        %892 = vmatpush2.xpose.msra.mxu0 0.0
        %893 = vmatprep.subr.mxu0 0.0
        %894 = vmatpush2.xpose.msra.mxu0 0.0
        %895 = vmatprep.subr.mxu0 0.0
        %896 = vmatpush2.xpose.msra.mxu0 0.0
        %897 = vmatprep.subr.mxu0 0.0
        %898 = vmatpush2.xpose.msra.mxu0 0.0
        %899 = vmatprep.subr.mxu0 0.0
        %900 = vmatpush2.xpose.msra.mxu0 0.0
        %901 = vmatprep.subr.mxu0 0.0
        %902 = vmatpush2.xpose.msra.mxu0 0.0
        %903 = vmatprep.subr.mxu0 0.0
        %904 = vmatpush2.xpose.msra.mxu0 0.0
        %905 = vmatprep.subr.mxu0 0.0
        %906 = vmatpush2.xpose.msra.mxu0 0.0
        %907 = vmatprep.subr.mxu0 0.0
        %908 = vmatpush2.xpose.msra.mxu0 0.0
        %909 = vmatprep.subr.mxu0 0.0
        %910 = vmatpush2.xpose.msra.mxu0 0.0
        %911 = vmatprep.subr.mxu0 0.0
        %912 = vmatpush2.xpose.msra.mxu0 0.0
        %913 = vmatprep.subr.mxu0 0.0
        %914 = vmatpush2.xpose.msra.mxu0 0.0
        %915 = vmatprep.mubr.f32.mxu0 0.0
        %916 = vmatmul.mubr.f32.gmra.mxu0 %v847
        %v917 = vpop.f32.mrf.mxu0
        %v918 = vadd.f32 0.0, %v917
        %v919 = vpop.f32.mrf.mxu0
        %920 = vdwg.mxu0
        %v921 = vsel %vm592, %v918, -inf
        %922 = vmax.xlane.f32.xlu0 %v921
        %v923 = vpop.xlane.xlu0 %922
        %v924 = vsub.f32 %v918, %v923
        %v925 = vmul.f32 %v924, 1.442695
        %v926 = vpow.pop %v925
        %v927 = vsel %vm592, %v926, 0.0
        %928 = vadd.xlane.f32.xlu0 %v927
        %v929 = vpop.xlane.xlu0 %928
        %v930 = vrcp.pop %v929
        %v931 = vmul.f32 %v926, %v930
        %932 = vrot.lane.b32.xlu0 %v511, 64
        %v933 = vpop.permute.xlu0 %932
        %v936 = vsel %vm592, %v931, 0
        %938 = vmatprep.subr.mxu0 0.0
        %939 = vmatpush1.msra.mxu0 0.0
        %940 = vmatprep.subr.mxu0 0.0
        %941 = vmatpush1.msra.mxu0 0.0
        %942 = vmatprep.subr.mxu0 0.0
        %943 = vmatpush1.msra.mxu0 0.0
        %944 = vmatprep.subr.mxu0 0.0
        %945 = vmatpush1.msra.mxu0 0.0
        %946 = vmatprep.subr.mxu0 0.0
        %947 = vmatpush1.msra.mxu0 0.0
        %948 = vmatprep.subr.mxu0 0.0
        %949 = vmatpush1.msra.mxu0 0.0
        %950 = vmatprep.subr.mxu0 0.0
        %951 = vmatpush1.msra.mxu0 0.0
        %952 = vmatprep.subr.mxu0 0.0
        %953 = vmatpush1.msra.mxu0 0.0
        %954 = vmatprep.subr.mxu0 0.0
        %955 = vmatpush1.msra.mxu0 0.0
        %956 = vmatprep.subr.mxu0 0.0
        %957 = vmatpush1.msra.mxu0 0.0
        %958 = vmatprep.subr.mxu0 0.0
        %959 = vmatpush1.msra.mxu0 0.0
        %960 = vmatprep.subr.mxu0 0.0
        %961 = vmatpush1.msra.mxu0 0.0
        %962 = vmatprep.subr.mxu0 0.0
        %963 = vmatpush1.msra.mxu0 0.0
        %964 = vmatprep.subr.mxu0 0.0
        %965 = vmatpush1.msra.mxu0 0.0
        %966 = vmatprep.subr.mxu0 0.0
        %967 = vmatpush1.msra.mxu0 0.0
        %968 = vmatprep.subr.mxu0 0.0
        %969 = vmatpush1.msra.mxu0 %v933
        %970 = vmatprep.subr.mxu0 0.0
        %971 = vmatpush2.msra.mxu0 0.0
        %972 = vmatprep.subr.mxu0 0.0
        %973 = vmatpush2.msra.mxu0 0.0
        %974 = vmatprep.subr.mxu0 0.0
        %975 = vmatpush2.msra.mxu0 0.0
        %976 = vmatprep.subr.mxu0 0.0
        %977 = vmatpush2.msra.mxu0 0.0
        %978 = vmatprep.subr.mxu0 0.0
        %979 = vmatpush2.msra.mxu0 0.0
        %980 = vmatprep.subr.mxu0 0.0
        %981 = vmatpush2.msra.mxu0 0.0
        %982 = vmatprep.subr.mxu0 0.0
        %983 = vmatpush2.msra.mxu0 0.0
        %984 = vmatprep.subr.mxu0 0.0
        %985 = vmatpush2.msra.mxu0 0.0
        %986 = vmatprep.subr.mxu0 0.0
        %987 = vmatpush2.msra.mxu0 0.0
        %988 = vmatprep.subr.mxu0 0.0
        %989 = vmatpush2.msra.mxu0 0.0
        %990 = vmatprep.subr.mxu0 0.0
        %991 = vmatpush2.msra.mxu0 0.0
        %992 = vmatprep.subr.mxu0 0.0
        %993 = vmatpush2.msra.mxu0 0.0
        %994 = vmatprep.subr.mxu0 0.0
        %995 = vmatpush2.msra.mxu0 0.0
        %996 = vmatprep.subr.mxu0 0.0
        %997 = vmatpush2.msra.mxu0 0.0
        %998 = vmatprep.subr.mxu0 0.0
        %999 = vmatpush2.msra.mxu0 0.0
        %1000 = vmatprep.subr.mxu0 0.0
        %1001 = vmatpush2.msra.mxu0 0.0
        %1002 = vmatprep.mubr.f32.mxu0 0.0
        %1003 = vmatmul.mubr.f32.gmra.mxu0 %v936
        %v1004 = vpop.f32.mrf.mxu0
        %v1005 = vadd.f32 0.0, %v1004
        %v1006 = vpop.f32.mrf.mxu0
        %1007 = vdwg.mxu0
        %1008 = vrot.lane.b32.xlu0 %v514, 32
        %v1009 = vpop.permute.xlu0 %1008
        %1010 = vrot.lane.b32.xlu0 %v442, 32
        %v1011 = vpop.permute.xlu0 %1010
        %v1012 = vsel %vm515, %v1009, 0
        %v1014 = vsel %vm515, %v1011, 0
        %1016 = vmatprep.subr.mxu0 0.0
        %1017 = vmatpush1.xpose.msra.mxu0 0.0
        %1018 = vmatprep.subr.mxu0 0.0
        %1019 = vmatpush1.xpose.msra.mxu0 0.0
        %1020 = vmatprep.subr.mxu0 0.0
        %1021 = vmatpush1.xpose.msra.mxu0 0.0
        %1022 = vmatprep.subr.mxu0 0.0
        %1023 = vmatpush1.xpose.msra.mxu0 0.0
        %1024 = vmatprep.subr.mxu0 0.0
        %1025 = vmatpush1.xpose.msra.mxu0 0.0
        %1026 = vmatprep.subr.mxu0 0.0
        %1027 = vmatpush1.xpose.msra.mxu0 0.0
        %1028 = vmatprep.subr.mxu0 0.0
        %1029 = vmatpush1.xpose.msra.mxu0 0.0
        %1030 = vmatprep.subr.mxu0 0.0
        %1031 = vmatpush1.xpose.msra.mxu0 0.0
        %1032 = vmatprep.subr.mxu0 0.0
        %1033 = vmatpush1.xpose.msra.mxu0 0.0
        %1034 = vmatprep.subr.mxu0 0.0
        %1035 = vmatpush1.xpose.msra.mxu0 0.0
        %1036 = vmatprep.subr.mxu0 0.0
        %1037 = vmatpush1.xpose.msra.mxu0 0.0
        %1038 = vmatprep.subr.mxu0 0.0
        %1039 = vmatpush1.xpose.msra.mxu0 0.0
        %1040 = vmatprep.subr.mxu0 0.0
        %1041 = vmatpush1.xpose.msra.mxu0 0.0
        %1042 = vmatprep.subr.mxu0 0.0
        %1043 = vmatpush1.xpose.msra.mxu0 0.0
        %1044 = vmatprep.subr.mxu0 0.0
        %1045 = vmatpush1.xpose.msra.mxu0 0.0
        %1046 = vmatprep.subr.mxu0 0.0
        %1047 = vmatpush1.xpose.msra.mxu0 %v1014
        %1048 = vmatprep.subr.mxu0 0.0
        %1049 = vmatpush2.xpose.msra.mxu0 0.0
        %1050 = vmatprep.subr.mxu0 0.0
        %1051 = vmatpush2.xpose.msra.mxu0 0.0
        %1052 = vmatprep.subr.mxu0 0.0
        %1053 = vmatpush2.xpose.msra.mxu0 0.0
        %1054 = vmatprep.subr.mxu0 0.0
        %1055 = vmatpush2.xpose.msra.mxu0 0.0
        %1056 = vmatprep.subr.mxu0 0.0
        %1057 = vmatpush2.xpose.msra.mxu0 0.0
        %1058 = vmatprep.subr.mxu0 0.0
        %1059 = vmatpush2.xpose.msra.mxu0 0.0
        %1060 = vmatprep.subr.mxu0 0.0
        %1061 = vmatpush2.xpose.msra.mxu0 0.0
        %1062 = vmatprep.subr.mxu0 0.0
        %1063 = vmatpush2.xpose.msra.mxu0 0.0
        %1064 = vmatprep.subr.mxu0 0.0
        %1065 = vmatpush2.xpose.msra.mxu0 0.0
        %1066 = vmatprep.subr.mxu0 0.0
        %1067 = vmatpush2.xpose.msra.mxu0 0.0
        %1068 = vmatprep.subr.mxu0 0.0
        %1069 = vmatpush2.xpose.msra.mxu0 0.0
        %1070 = vmatprep.subr.mxu0 0.0
        %1071 = vmatpush2.xpose.msra.mxu0 0.0
        %1072 = vmatprep.subr.mxu0 0.0
        %1073 = vmatpush2.xpose.msra.mxu0 0.0
        %1074 = vmatprep.subr.mxu0 0.0
        %1075 = vmatpush2.xpose.msra.mxu0 0.0
        %1076 = vmatprep.subr.mxu0 0.0
        %1077 = vmatpush2.xpose.msra.mxu0 0.0
        %1078 = vmatprep.subr.mxu0 0.0
        %1079 = vmatpush2.xpose.msra.mxu0 0.0
        %1080 = vmatprep.mubr.f32.mxu0 0.0
        %1081 = vmatmul.mubr.f32.gmra.mxu0 %v1012
        %v1082 = vpop.f32.mrf.mxu0
        %v1083 = vadd.f32 0.0, %v1082
        %v1084 = vpop.f32.mrf.mxu0
        %1085 = vdwg.mxu0
        %v1086 = vsel %vm592, %v1083, -inf
        %1087 = vmax.xlane.f32.xlu0 %v1086
        %v1088 = vpop.xlane.xlu0 %1087
        %v1089 = vsub.f32 %v1083, %v1088
        %v1090 = vmul.f32 %v1089, 1.442695
        %v1091 = vpow.pop %v1090
        %v1092 = vsel %vm592, %v1091, 0.0
        %1093 = vadd.xlane.f32.xlu0 %v1092
        %v1094 = vpop.xlane.xlu0 %1093
        %v1095 = vrcp.pop %v1094
        %v1096 = vmul.f32 %v1091, %v1095
        %1097 = vrot.lane.b32.xlu0 %v511, 32
        %v1098 = vpop.permute.xlu0 %1097
        %v1101 = vsel %vm592, %v1096, 0
        %1103 = vmatprep.subr.mxu0 0.0
        %1104 = vmatpush1.msra.mxu0 0.0
        %1105 = vmatprep.subr.mxu0 0.0
        %1106 = vmatpush1.msra.mxu0 0.0
        %1107 = vmatprep.subr.mxu0 0.0
        %1108 = vmatpush1.msra.mxu0 0.0
        %1109 = vmatprep.subr.mxu0 0.0
        %1110 = vmatpush1.msra.mxu0 0.0
        %1111 = vmatprep.subr.mxu0 0.0
        %1112 = vmatpush1.msra.mxu0 0.0
        %1113 = vmatprep.subr.mxu0 0.0
        %1114 = vmatpush1.msra.mxu0 0.0
        %1115 = vmatprep.subr.mxu0 0.0
        %1116 = vmatpush1.msra.mxu0 0.0
        %1117 = vmatprep.subr.mxu0 0.0
        %1118 = vmatpush1.msra.mxu0 0.0
        %1119 = vmatprep.subr.mxu0 0.0
        %1120 = vmatpush1.msra.mxu0 0.0
        %1121 = vmatprep.subr.mxu0 0.0
        %1122 = vmatpush1.msra.mxu0 0.0
        %1123 = vmatprep.subr.mxu0 0.0
        %1124 = vmatpush1.msra.mxu0 0.0
        %1125 = vmatprep.subr.mxu0 0.0
        %1126 = vmatpush1.msra.mxu0 0.0
        %1127 = vmatprep.subr.mxu0 0.0
        %1128 = vmatpush1.msra.mxu0 0.0
        %1129 = vmatprep.subr.mxu0 0.0
        %1130 = vmatpush1.msra.mxu0 0.0
        %1131 = vmatprep.subr.mxu0 0.0
        %1132 = vmatpush1.msra.mxu0 0.0
        %1133 = vmatprep.subr.mxu0 0.0
        %1134 = vmatpush1.msra.mxu0 %v1098
        %1135 = vmatprep.subr.mxu0 0.0
        %1136 = vmatpush2.msra.mxu0 0.0
        %1137 = vmatprep.subr.mxu0 0.0
        %1138 = vmatpush2.msra.mxu0 0.0
        %1139 = vmatprep.subr.mxu0 0.0
        %1140 = vmatpush2.msra.mxu0 0.0
        %1141 = vmatprep.subr.mxu0 0.0
        %1142 = vmatpush2.msra.mxu0 0.0
        %1143 = vmatprep.subr.mxu0 0.0
        %1144 = vmatpush2.msra.mxu0 0.0
        %1145 = vmatprep.subr.mxu0 0.0
        %1146 = vmatpush2.msra.mxu0 0.0
        %1147 = vmatprep.subr.mxu0 0.0
        %1148 = vmatpush2.msra.mxu0 0.0
        %1149 = vmatprep.subr.mxu0 0.0
        %1150 = vmatpush2.msra.mxu0 0.0
        %1151 = vmatprep.subr.mxu0 0.0
        %1152 = vmatpush2.msra.mxu0 0.0
        %1153 = vmatprep.subr.mxu0 0.0
        %1154 = vmatpush2.msra.mxu0 0.0
        %1155 = vmatprep.subr.mxu0 0.0
        %1156 = vmatpush2.msra.mxu0 0.0
        %1157 = vmatprep.subr.mxu0 0.0
        %1158 = vmatpush2.msra.mxu0 0.0
        %1159 = vmatprep.subr.mxu0 0.0
        %1160 = vmatpush2.msra.mxu0 0.0
        %1161 = vmatprep.subr.mxu0 0.0
        %1162 = vmatpush2.msra.mxu0 0.0
        %1163 = vmatprep.subr.mxu0 0.0
        %1164 = vmatpush2.msra.mxu0 0.0
        %1165 = vmatprep.subr.mxu0 0.0
        %1166 = vmatpush2.msra.mxu0 0.0
        %1167 = vmatprep.mubr.f32.mxu0 0.0
        %1168 = vmatmul.mubr.f32.gmra.mxu0 %v1101
        %v1169 = vpop.f32.mrf.mxu0
        %v1170 = vadd.f32 0.0, %v1169
        %v1171 = vpop.f32.mrf.mxu0
        %1172 = vdwg.mxu0
        %1174 = vrot.lane.b32.xlu0 %v840, 32
        %v1175 = vpop.permute.xlu0 %1174
        %1178 = vrot.lane.b32.xlu0 %v1005, 64
        %v1179 = vpop.permute.xlu0 %1178
        %1182 = vrot.lane.b32.xlu0 %v1170, 96
        %v1183 = vpop.permute.xlu0 %1182
        %v1185 = vsel %vm515, %v674, %v1175
        %vm1186 = vcmask 523264
        %v1187 = vsel %vm1186, %v1185, %v1179
        %vm1188 = vcmask 785408
        %v1189 = vsel %vm1188, %v1187, %v1183
        %v1190 = vld [vmem:[#allocation7] sm:$0xff]
        %v1191 = vld [vmem:[#allocation7 + $0x8] sm:$0xff]
        %v1192 = vld [vmem:[#allocation7 + $0x10] sm:$0xff]
        %v1193 = vld [vmem:[#allocation7 + $0x18] sm:$0xff]
        %v1194 = vld [vmem:[#allocation7 + $0x20] sm:$0xff]
        %v1195 = vld [vmem:[#allocation7 + $0x28] sm:$0xff]
        %v1196 = vld [vmem:[#allocation7 + $0x30] sm:$0xff]
        %v1197 = vld [vmem:[#allocation7 + $0x38] sm:$0xff]
        %v1198 = vld [vmem:[#allocation7 + $0x40] sm:$0xff]
        %v1199 = vld [vmem:[#allocation7 + $0x48] sm:$0xff]
        %v1200 = vld [vmem:[#allocation7 + $0x50] sm:$0xff]
        %v1201 = vld [vmem:[#allocation7 + $0x58] sm:$0xff]
        %v1202 = vld [vmem:[#allocation7 + $0x60] sm:$0xff]
        %v1203 = vld [vmem:[#allocation7 + $0x68] sm:$0xff]
        %v1204 = vld [vmem:[#allocation7 + $0x70] sm:$0xff]
        %v1205 = vld [vmem:[#allocation7 + $0x78] sm:$0xff]
        %1206 = vmatprep.subr.mxu0 0.0
        %1207 = vmatpush1.msra.mxu0 %v1205
        %1208 = vmatprep.subr.mxu0 0.0
        %1209 = vmatpush1.msra.mxu0 %v1204
        %1210 = vmatprep.subr.mxu0 0.0
        %1211 = vmatpush1.msra.mxu0 %v1203
        %1212 = vmatprep.subr.mxu0 0.0
        %1213 = vmatpush1.msra.mxu0 %v1202
        %1214 = vmatprep.subr.mxu0 0.0
        %1215 = vmatpush1.msra.mxu0 %v1201
        %1216 = vmatprep.subr.mxu0 0.0
        %1217 = vmatpush1.msra.mxu0 %v1200
        %1218 = vmatprep.subr.mxu0 0.0
        %1219 = vmatpush1.msra.mxu0 %v1199
        %1220 = vmatprep.subr.mxu0 0.0
        %1221 = vmatpush1.msra.mxu0 %v1198
        %1222 = vmatprep.subr.mxu0 0.0
        %1223 = vmatpush1.msra.mxu0 %v1197
        %1224 = vmatprep.subr.mxu0 0.0
        %1225 = vmatpush1.msra.mxu0 %v1196
        %1226 = vmatprep.subr.mxu0 0.0
        %1227 = vmatpush1.msra.mxu0 %v1195
        %1228 = vmatprep.subr.mxu0 0.0
        %1229 = vmatpush1.msra.mxu0 %v1194
        %1230 = vmatprep.subr.mxu0 0.0
        %1231 = vmatpush1.msra.mxu0 %v1193
        %1232 = vmatprep.subr.mxu0 0.0
        %1233 = vmatpush1.msra.mxu0 %v1192
        %1234 = vmatprep.subr.mxu0 0.0
        %1235 = vmatpush1.msra.mxu0 %v1191
        %1236 = vmatprep.subr.mxu0 0.0
        %1237 = vmatpush1.msra.mxu0 %v1190
        %1238 = vmatprep.subr.mxu0 0.0
        %1239 = vmatpush2.msra.mxu0 0.0
        %1240 = vmatprep.subr.mxu0 0.0
        %1241 = vmatpush2.msra.mxu0 0.0
        %1242 = vmatprep.subr.mxu0 0.0
        %1243 = vmatpush2.msra.mxu0 0.0
        %1244 = vmatprep.subr.mxu0 0.0
        %1245 = vmatpush2.msra.mxu0 0.0
        %1246 = vmatprep.subr.mxu0 0.0
        %1247 = vmatpush2.msra.mxu0 0.0
        %1248 = vmatprep.subr.mxu0 0.0
        %1249 = vmatpush2.msra.mxu0 0.0
        %1250 = vmatprep.subr.mxu0 0.0
        %1251 = vmatpush2.msra.mxu0 0.0
        %1252 = vmatprep.subr.mxu0 0.0
        %1253 = vmatpush2.msra.mxu0 0.0
        %1254 = vmatprep.subr.mxu0 0.0
        %1255 = vmatpush2.msra.mxu0 0.0
        %1256 = vmatprep.subr.mxu0 0.0
        %1257 = vmatpush2.msra.mxu0 0.0
        %1258 = vmatprep.subr.mxu0 0.0
        %1259 = vmatpush2.msra.mxu0 0.0
        %1260 = vmatprep.subr.mxu0 0.0
        %1261 = vmatpush2.msra.mxu0 0.0
        %1262 = vmatprep.subr.mxu0 0.0
        %1263 = vmatpush2.msra.mxu0 0.0
        %1264 = vmatprep.subr.mxu0 0.0
        %1265 = vmatpush2.msra.mxu0 0.0
        %1266 = vmatprep.subr.mxu0 0.0
        %1267 = vmatpush2.msra.mxu0 0.0
        %1268 = vmatprep.subr.mxu0 0.0
        %1269 = vmatpush2.msra.mxu0 0.0
        %1270 = vmatprep.mubr.f32.mxu0 0.0
        %1271 = vmatmul.mubr.f32.gmra.mxu0 %v1189
        %v1272 = vpop.f32.mrf.mxu0
        %v1273 = vadd.f32 0.0, %v1272
        %v1274 = vpop.f32.mrf.mxu0
        %1275 = vdwg.mxu0
        %v1276 = vadd.f32 %v296, %v1273
        %v1277 = vld [vmem:[%s5] sm:$0x1]
        %v1279 = vlaneseq
        %v1280 = vshrl.u32 %v1279, 7
        %v1281 = vsub.s32 0, %v1280
        %v1282 = vrot.slane %v1277, %v1281
        %v1284 = vadd.f32 %v1276, %v1282
        %1285 = vst [vmem:[%s295] sm:$0xff] %v1284
        %s1286 = sand.u32 %s163, 1
        %s1287 = scalar_lea.sflag [#allocation4], %s1286
        %s1288 = sand.u32 %s163, 1
        %s1289 = smul.addr %s1288, 8
        %s1290 = scalar_lea.vmem [#allocation8], %s1289
        // Predicated region
        $region57: #{tpu_custom_call.1} parent=43 // pred_check
          %p1291 = pneg %p173
        $region58: #{tpu_custom_call.1} parent=43 // pred_check_branch
          %1293 = sbr.rel (%p1291) target = $region60
        $region59: #{tpu_custom_call.1} parent=43 // pred_region
          %s1295 = ssub.s32 128, 128
          %1296 = vsyncadd %s1287, %s1295
          %s1297 = smul.addr %s24, 128
          %s1298 = scalar_lea.hbm %s6, %s1297
          %s1300 = sshll.u32 %s1290, 4
          %s1301 = int_to_ptr.vmem [resolvable:$true] %s1300
          %1303 = dma.vmem_to_hbm [thread:$0]  %s1301, 128, %s1298, %s1287
        $region60: #{tpu_custom_call.1} parent=43 // pred_fallthru
          _
      $region44: #{tpu_custom_call.1} parent=5 // pred_fallthru
        _
      %p1304 = scmp.le.s32.totalorder 2, %s19
      // Predicated region
      $region61: #{tpu_custom_call.1} parent=5 // pred_check
        %p1305 = pneg %p1304
      $region62: #{tpu_custom_call.1} parent=5 // pred_check_branch
        %1307 = sbr.rel (%p1305) target = $region64
      $region63: #{tpu_custom_call.1} parent=5 // pred_region
        %s1308 = ssub.s32 %s19, 2
        // Predicated region
        $region65: #{tpu_custom_call.1} parent=63 // pred_check
          %p1309 = pneg %p179
        $region66: #{tpu_custom_call.1} parent=63 // pred_check_branch
          %1311 = sbr.rel (%p1309) target = $region68
        $region67: #{tpu_custom_call.1} parent=63 // pred_region
          %s1312 = sand.u32 %s164, 1
          %s1313 = scalar_lea.sflag [#allocation4], %s1312
          %s1314 = sand.u32 %s164, 1
          %s1315 = smul.addr %s1314, 8
          %s1316 = scalar_lea.vmem [#allocation8], %s1315
          %1317 = dma.done %s1313, 128
        $region68: #{tpu_custom_call.1} parent=63 // pred_fallthru
          _
      $region64: #{tpu_custom_call.1} parent=5 // pred_fallthru
        _
    $region6: #{tpu_custom_call.1} parent=1 // loop_footer
      %s23 = sadd.s32 1, %s19
    $region7: #{tpu_custom_call.1} parent=1 // loop_footer_branch
      %18 = sbr.rel target = $region3
    $region8: #{tpu_custom_call.1} parent=1 // loop_exit
      _
    %1318 = vsyncpa [#allocation3], 1
    %s1319 = scalar_lea.sflag [#allocation3], 1
    %1320 = vsyncpa %s1319, 1
    %1321 = vsyncpa [#allocation6], 1
    %1322 = vsyncpa [#allocation4], 1
    %s1323 = scalar_lea.sflag [#allocation4], 1
    %1324 = vsyncpa %s1323, 1

</llo_original>
